<compile_context>
chip_gen: v6e
topology: v6e:2x2x1
jax: 0.10.0
libtpu: 0.0.40
codegen_flags: <defaults>
</compile_context>

<pallas_src>
import functools

import jax
import jax.numpy as jnp
from jax.experimental import pallas as pl
from jax.experimental.pallas import tpu as pltpu


def _gating_kernel(x_ref, w1_ref, b1_ref, w2_ref, b2_ref, w3_ref, b3_ref,
                   o_ref, *, softmax):
    neg_slope = jnp.float32(0.01)  # PyTorch LeakyReLU default

    # Layer 1: Linear(input_dim -> hidden) + LeakyReLU  (bf16 matmul, f32 accumulate)
    xb = x_ref[...].astype(jnp.bfloat16)
    h = jnp.dot(xb, w1_ref[...], preferred_element_type=jnp.float32)
    h = h + b1_ref[...]
    h = jnp.where(h >= 0, h, neg_slope * h)

    # Layer 2 (num_layers=2 -> one extra hidden layer): Linear(hidden -> hidden) + LeakyReLU
    h = jnp.dot(h.astype(jnp.bfloat16), w2_ref[...],
                preferred_element_type=jnp.float32)
    h = h + b2_ref[...]
    h = jnp.where(h >= 0, h, neg_slope * h)

    # Output layer, batch-major [TB, out_dim]. Temperature already folded into w3/b3
    # when softmax is enabled.
    out = jnp.dot(h.astype(jnp.bfloat16), w3_ref[...],
                  preferred_element_type=jnp.float32)
    out = out + b3_ref[...]

    if softmax:
        # softmax over the class axis (last dim, = PyTorch dim=1).
        z = out - jnp.max(out, axis=-1, keepdims=True)
        e = jnp.exp(z)
        out = e / jnp.sum(e, axis=-1, keepdims=True)   # exact normalization ([TB,1] divide)

    o_ref[...] = out.astype(o_ref.dtype)


def prepare_params(params, *, softmax, temperature):
    """One-time host-side transform of the f32 parameters.

    - Weights cast to bf16 (f32 accumulation happens on the MXU).
    - Temperature folded (in f32) into the last layer when softmax is enabled:
        softmax((h @ w3 + b3)/T) == softmax(h @ (w3/T) + b3/T).
    """
    w3 = params["w3"]
    b3 = params["b3"]
    if softmax:
        inv_t = jnp.float32(1.0 / temperature)
        w3 = w3 * inv_t
        b3 = b3 * inv_t
    return {
        "w1": params["w1"].astype(jnp.bfloat16),   # [in, hid]
        "b1": params["b1"].reshape(1, -1),         # [1, hid]  f32
        "w2": params["w2"].astype(jnp.bfloat16),   # [hid, hid]
        "b2": params["b2"].reshape(1, -1),         # [1, hid]  f32
        "w3": w3.astype(jnp.bfloat16),             # [hid, out]
        "b3": b3.reshape(1, -1),                   # [1, out]  f32
    }


def _pick_batch_tile(B, tb_max=1024, min_grid=2):
    """Largest batch tile tb that divides B, is a multiple of 128 (then 8), fits
    tb_max, and — when possible — gives a grid of >= min_grid (preferably even)
    steps so megacore sharding and double-buffered pipelining actually engage."""
    cap = min(tb_max, B)

    def divisors_aligned(align):
        start = cap - (cap % align)
        return [t for t in range(start, 0, -align) if t > 0 and B % t == 0]

    cands = divisors_aligned(128) or divisors_aligned(8) or [B]

    # 1st choice: even grid length >= min_grid (both v7x TCs get equal work).
    for t in cands:
        g = B // t
        if g >= min_grid and g % 2 == 0:
            return t
    # 2nd choice: any grid length >= min_grid (pipeline still has >1 iteration).
    for t in cands:
        if B // t >= min_grid:
            return t
    # Fallback: single block (tiny / ragged batch).
    return cands[0]


def gating_nn_forward(x, prepped, *, softmax, tb_max=1024):
    """Fused GatingNN forward. x: [B, input_dim] f32, prepped: prepare_params() output."""
    B, d_in = x.shape
    hid, out_dim = prepped["w3"].shape
    tb = _pick_batch_tile(B, tb_max)
    grid = (pl.cdiv(B, tb),)

    # Advisory cost hint: 3 matmuls + (optional) exp, plus HBM traffic.
    flops = 2 * B * (d_in * hid + hid * hid + hid * out_dim)
    param_bytes = sum(int(v.size) * v.dtype.itemsize for v in prepped.values())
    bytes_accessed = int(x.size) * x.dtype.itemsize + param_bytes + B * out_dim * 4
    cost = pl.CostEstimate(
        flops=flops,
        transcendentals=B * out_dim if softmax else 0,
        bytes_accessed=bytes_accessed,
    )

    kernel = functools.partial(_gating_kernel, softmax=softmax)
    resident = lambda a: pl.BlockSpec(a.shape, lambda i: (0, 0))  # VMEM-resident across grid

    return pl.pallas_call(
        kernel,
        out_shape=jax.ShapeDtypeStruct((B, out_dim), jnp.float32),
        grid=grid,
        in_specs=[
            pl.BlockSpec((tb, d_in), lambda i: (i, 0)),   # x tile (batch-major)
            resident(prepped["w1"]), resident(prepped["b1"]),
            resident(prepped["w2"]), resident(prepped["b2"]),
            resident(prepped["w3"]), resident(prepped["b3"]),
        ],
        out_specs=pl.BlockSpec((tb, out_dim), lambda i: (i, 0)),
        compiler_params=pltpu.CompilerParams(
            dimension_semantics=("parallel",),  # megacore sharding on v7x
        ),
        cost_estimate=cost,
    )(x, prepped["w1"], prepped["b1"], prepped["w2"], prepped["b2"],
      prepped["w3"], prepped["b3"])


def init_params(key, input_dim, hidden_dim, output_dim):
    """Deterministic synthetic init (uniform like PyTorch nn.Linear default)."""
    ks = jax.random.split(key, 6)

    def lin(kw, kb, fan_in, fan_out):
        bound = 1.0 / jnp.sqrt(jnp.float32(fan_in))
        w = jax.random.uniform(kw, (fan_in, fan_out), jnp.float32, -bound, bound)
        b = jax.random.uniform(kb, (1, fan_out), jnp.float32, -bound, bound)
        return w, b

    w1, b1 = lin(ks[0], ks[1], input_dim, hidden_dim)
    w2, b2 = lin(ks[2], ks[3], hidden_dim, hidden_dim)
    w3, b3 = lin(ks[4], ks[5], hidden_dim, output_dim)
    return {"w1": w1, "b1": b1, "w2": w2, "b2": b2, "w3": w3, "b3": b3}


def _reference(x, p, softmax, temperature):
    neg = 0.01
    h = x @ p["w1"] + p["b1"]
    h = jnp.where(h >= 0, h, neg * h)
    h = h @ p["w2"] + p["b2"]
    h = jnp.where(h >= 0, h, neg * h)
    out = h @ p["w3"] + p["b3"]
    if softmax:
        out = jax.nn.softmax(out / temperature, axis=1)
    return out


if __name__ == "__main__":
    # GatingNN(input_dim=32, output_dim=16, hidden_dim=128, num_layers=2,
    #          temperature=0.5, dropout_prob=0.0, softmax=True), batch=512.
    B, input_dim, hidden_dim, output_dim = 512, 32, 128, 16
    temperature = 0.5

    key = jax.random.PRNGKey(0)
    kx, kp = jax.random.split(key)
    x = jax.random.normal(kx, (B, input_dim), jnp.float32)
    params = init_params(kp, input_dim, hidden_dim, output_dim)

    # With B=512, tb_max=1024 the picker chooses tb=256 -> grid=(2,): both v7x TCs
    # busy and the pipeline has two iterations to overlap.
    assert _pick_batch_tile(B) == 256

    # softmax head
    pp_sm = prepare_params(params, softmax=True, temperature=temperature)
    out_sm = jax.block_until_ready(gating_nn_forward(x, pp_sm, softmax=True))
    ref_sm = _reference(x, params, True, temperature)
    assert out_sm.shape == (B, output_dim)
    # bf16 matmul operands -> relaxed tolerance vs. f32 reference.
    assert jnp.allclose(out_sm, ref_sm, atol=2e-2, rtol=2e-2)
    # exact divide in the kernel -> rows sum to 1 within f32 precision.
    assert jnp.allclose(jnp.sum(out_sm, axis=1), 1.0, atol=1e-5)

    # plain (softmax=False) head
    pp_id = prepare_params(params, softmax=False, temperature=temperature)
    out_id = jax.block_until_ready(gating_nn_forward(x, pp_id, softmax=False))
    ref_id = _reference(x, params, False, temperature)
    assert out_id.shape == (B, output_dim)
    assert jnp.allclose(out_id, ref_id, atol=2e-2, rtol=2e-2)

    print("KERNEL_OK")
</pallas_src>

<mosaic_0001>
module attributes {stable_mosaic.version = 11 : i64} {
  func.func @_gating_kernel(%arg0: i32, %arg1: memref<256x32xf32, #tpu.memory_space<vmem>>, %arg2: memref<32x128xbf16, #tpu.memory_space<vmem>>, %arg3: memref<1x128xf32, #tpu.memory_space<vmem>>, %arg4: memref<128x128xbf16, #tpu.memory_space<vmem>>, %arg5: memref<1x128xf32, #tpu.memory_space<vmem>>, %arg6: memref<128x16xbf16, #tpu.memory_space<vmem>>, %arg7: memref<1x16xf32, #tpu.memory_space<vmem>>, %arg8: memref<256x16xf32, #tpu.memory_space<vmem>>) attributes {dimension_semantics = [#tpu.dimension_semantics<parallel>], iteration_bounds = array<i64: 2>, scalar_prefetch = 0 : i64, scratch_operands = 0 : i64, tpu.core_type = #tpu.core_type<tc>, window_params = [{transform_indices = @transform_0, window_bounds = array<i64: 256, 32>}, {pipeline_mode = #tpu.pipeline_mode<synchronous>, transform_indices = @transform_1, window_bounds = array<i64: 32, 128>}, {pipeline_mode = #tpu.pipeline_mode<synchronous>, transform_indices = @transform_2, window_bounds = array<i64: 1, 128>}, {pipeline_mode = #tpu.pipeline_mode<synchronous>, transform_indices = @transform_3, window_bounds = array<i64: 128, 128>}, {pipeline_mode = #tpu.pipeline_mode<synchronous>, transform_indices = @transform_4, window_bounds = array<i64: 1, 128>}, {pipeline_mode = #tpu.pipeline_mode<synchronous>, transform_indices = @transform_5, window_bounds = array<i64: 128, 16>}, {pipeline_mode = #tpu.pipeline_mode<synchronous>, transform_indices = @transform_6, window_bounds = array<i64: 1, 16>}, {transform_indices = @transform_7, window_bounds = array<i64: 256, 16>}]} {
    %c0 = arith.constant 0 : index
    %c0_0 = arith.constant 0 : index
    %0 = vector.load %arg1[%c0, %c0_0] : memref<256x32xf32, #tpu.memory_space<vmem>>, vector<256x32xf32>
    %1 = arith.truncf %0 : vector<256x32xf32> to vector<256x32xbf16>
    %c0_1 = arith.constant 0 : index
    %c0_2 = arith.constant 0 : index
    %2 = vector.load %arg2[%c0_1, %c0_2] : memref<32x128xbf16, #tpu.memory_space<vmem>>, vector<32x128xbf16>
    %cst = arith.constant dense<0.000000e+00> : vector<256x128xf32>
    %3 = tpu.matmul %1, %2, %cst {dimension_numbers = #tpu.dot_dimension_numbers<[1], [0], [0], [1], [0, 0, 1, 1], [], []>} : vector<256x32xbf16>, vector<32x128xbf16>, vector<256x128xf32> -> vector<256x128xf32>
    %c0_3 = arith.constant 0 : index
    %c0_4 = arith.constant 0 : index
    %4 = vector.load %arg3[%c0_3, %c0_4] : memref<1x128xf32, #tpu.memory_space<vmem>>, vector<1x128xf32>
    %5 = vector.broadcast %4 : vector<1x128xf32> to vector<256x128xf32>
    %6 = arith.addf %3, %5 : vector<256x128xf32>
    %cst_5 = arith.constant 0.000000e+00 : f32
    %7 = vector.broadcast %cst_5 : f32 to vector<256x128xf32>
    %8 = arith.cmpf oge, %6, %7 : vector<256x128xf32>
    %cst_6 = arith.constant 0.00999999977 : f32
    %9 = vector.broadcast %cst_6 : f32 to vector<256x128xf32>
    %10 = arith.mulf %9, %6 : vector<256x128xf32>
    %11 = arith.select %8, %6, %10 : vector<256x128xi1>, vector<256x128xf32>
    %12 = arith.truncf %11 : vector<256x128xf32> to vector<256x128xbf16>
    %c0_7 = arith.constant 0 : index
    %c0_8 = arith.constant 0 : index
    %13 = vector.load %arg4[%c0_7, %c0_8] : memref<128x128xbf16, #tpu.memory_space<vmem>>, vector<128x128xbf16>
    %cst_9 = arith.constant dense<0.000000e+00> : vector<256x128xf32>
    %14 = tpu.matmul %12, %13, %cst_9 {dimension_numbers = #tpu.dot_dimension_numbers<[1], [0], [0], [1], [0, 0, 1, 1], [], []>} : vector<256x128xbf16>, vector<128x128xbf16>, vector<256x128xf32> -> vector<256x128xf32>
    %c0_10 = arith.constant 0 : index
    %c0_11 = arith.constant 0 : index
    %15 = vector.load %arg5[%c0_10, %c0_11] : memref<1x128xf32, #tpu.memory_space<vmem>>, vector<1x128xf32>
    %16 = vector.broadcast %15 : vector<1x128xf32> to vector<256x128xf32>
    %17 = arith.addf %14, %16 : vector<256x128xf32>
    %cst_12 = arith.constant 0.000000e+00 : f32
    %18 = vector.broadcast %cst_12 : f32 to vector<256x128xf32>
    %19 = arith.cmpf oge, %17, %18 : vector<256x128xf32>
    %cst_13 = arith.constant 0.00999999977 : f32
    %20 = vector.broadcast %cst_13 : f32 to vector<256x128xf32>
    %21 = arith.mulf %20, %17 : vector<256x128xf32>
    %22 = arith.select %19, %17, %21 : vector<256x128xi1>, vector<256x128xf32>
    %23 = arith.truncf %22 : vector<256x128xf32> to vector<256x128xbf16>
    %c0_14 = arith.constant 0 : index
    %c0_15 = arith.constant 0 : index
    %24 = vector.load %arg6[%c0_14, %c0_15] : memref<128x16xbf16, #tpu.memory_space<vmem>>, vector<128x16xbf16>
    %cst_16 = arith.constant dense<0.000000e+00> : vector<256x16xf32>
    %25 = tpu.matmul %23, %24, %cst_16 {dimension_numbers = #tpu.dot_dimension_numbers<[1], [0], [0], [1], [0, 0, 1, 1], [], []>} : vector<256x128xbf16>, vector<128x16xbf16>, vector<256x16xf32> -> vector<256x16xf32>
    %c0_17 = arith.constant 0 : index
    %c0_18 = arith.constant 0 : index
    %26 = vector.load %arg7[%c0_17, %c0_18] : memref<1x16xf32, #tpu.memory_space<vmem>>, vector<1x16xf32>
    %27 = vector.broadcast %26 : vector<1x16xf32> to vector<256x16xf32>
    %28 = arith.addf %25, %27 : vector<256x16xf32>
    %cst_19 = arith.constant dense<0xFF800000> : vector<256xf32>
    %29 = vector.multi_reduction <maximumf>, %28, %cst_19 [1] : vector<256x16xf32> to vector<256xf32>
    %30 = vector.shape_cast %29 : vector<256xf32> to vector<256x1xf32>
    %31 = vector.broadcast %30 : vector<256x1xf32> to vector<256x16xf32>
    %32 = arith.subf %28, %31 : vector<256x16xf32>
    %33 = math.exp %32 : vector<256x16xf32>
    %cst_20 = arith.constant dense<0.000000e+00> : vector<256xf32>
    %34 = vector.multi_reduction <add>, %33, %cst_20 [1] : vector<256x16xf32> to vector<256xf32>
    %35 = vector.shape_cast %34 : vector<256xf32> to vector<256x1xf32>
    %36 = vector.broadcast %35 : vector<256x1xf32> to vector<256x16xf32>
    %37 = arith.divf %33, %36 : vector<256x16xf32>
    %c0_21 = arith.constant 0 : index
    %c0_22 = arith.constant 0 : index
    %38 = vector.load %arg8[%c0_21, %c0_22] : memref<256x16xf32, #tpu.memory_space<vmem>>, vector<256x16xf32>
    tpu.vector_store %arg8[%c0_21, %c0_22], %37 {strides = array<i32>} : memref<256x16xf32, #tpu.memory_space<vmem>>, vector<256x16xf32>,
    return
  }
  func.func @transform_0(%arg0: i32) -> (i32, i32) {
    %c0_i32 = arith.constant 0 : i32
    %c0_i32_0 = arith.constant 0 : i32
    return %arg0, %c0_i32 : i32, i32
  }
  func.func @transform_1(%arg0: i32) -> (i32, i32) {
    %c0_i32 = arith.constant 0 : i32
    %c0_i32_0 = arith.constant 0 : i32
    %c0_i32_1 = arith.constant 0 : i32
    return %c0_i32, %c0_i32_0 : i32, i32
  }
  func.func @transform_2(%arg0: i32) -> (i32, i32) {
    %c0_i32 = arith.constant 0 : i32
    %c0_i32_0 = arith.constant 0 : i32
    %c0_i32_1 = arith.constant 0 : i32
    return %c0_i32, %c0_i32_0 : i32, i32
  }
  func.func @transform_3(%arg0: i32) -> (i32, i32) {
    %c0_i32 = arith.constant 0 : i32
    %c0_i32_0 = arith.constant 0 : i32
    %c0_i32_1 = arith.constant 0 : i32
    return %c0_i32, %c0_i32_0 : i32, i32
  }
  func.func @transform_4(%arg0: i32) -> (i32, i32) {
    %c0_i32 = arith.constant 0 : i32
    %c0_i32_0 = arith.constant 0 : i32
    %c0_i32_1 = arith.constant 0 : i32
    return %c0_i32, %c0_i32_0 : i32, i32
  }
  func.func @transform_5(%arg0: i32) -> (i32, i32) {
    %c0_i32 = arith.constant 0 : i32
    %c0_i32_0 = arith.constant 0 : i32
    %c0_i32_1 = arith.constant 0 : i32
    return %c0_i32, %c0_i32_0 : i32, i32
  }
  func.func @transform_6(%arg0: i32) -> (i32, i32) {
    %c0_i32 = arith.constant 0 : i32
    %c0_i32_0 = arith.constant 0 : i32
    %c0_i32_1 = arith.constant 0 : i32
    return %c0_i32, %c0_i32_0 : i32, i32
  }
  func.func @transform_7(%arg0: i32) -> (i32, i32) {
    %c0_i32 = arith.constant 0 : i32
    %c0_i32_0 = arith.constant 0 : i32
    return %arg0, %c0_i32 : i32, i32
  }
}

</mosaic_0001>

<llo_original>
// kernel: tpu_custom_call.1
$region0: #{tpu_custom_call.1}
  #allocation0 [shape = 'u32[]', space=smem, size = 0x4, offset = 0x4, fixed_abs, tag = 'smem constant byte address 0x4 - core index']
  #allocation1 [shape = 'u32[144,128]{1,0:T(1,128)}', space=vmem, size = 0x12000, scoped, tag = 'internal scratch']
  %s0 = inlined_call_operand.vmem [shape: f32[512,32], index: 0, kind: input, shape index: {}]
  %s1 = inlined_call_operand.vmem [shape: bf16[32,128], index: 1, kind: input, shape index: {}]
  %s2 = inlined_call_operand.vmem [shape: f32[1,128], index: 2, kind: input, shape index: {}]
  %s3 = inlined_call_operand.vmem [shape: bf16[128,128], index: 3, kind: input, shape index: {}]
  %s4 = inlined_call_operand.vmem [shape: f32[1,128], index: 4, kind: input, shape index: {}]
  %s5 = inlined_call_operand.vmem [shape: bf16[128,16], index: 5, kind: input, shape index: {}]
  %s6 = inlined_call_operand.vmem [shape: f32[1,16], index: 6, kind: input, shape index: {}]
  %s7 = inlined_call_operand.vmem [shape: f32[512,16], index: 7, kind: output, shape index: {}]
  %s8 = sld [smem:[#allocation0]]
  $region61: #{tpu_custom_call.1} parent=0
    _
  %s10 = ssub.s32 1, %s8
  %s11 = scalar_select 0, %s10, %s8
  loop: start=0, step=1, limit=4
  $region2: #{tpu_custom_call.1} parent=0 // loop_pre_header
    _
  $region3: #{tpu_custom_call.1} parent=0 // loop_header
    %s13 = sphi 0, %s17
    %p14 = scmp.ge.s32.totalorder %s13, 4
    %s23 = sphi 0, %s25
    %s26 = sphi 0, %s23
    %s27 = sphi 0, %s26
    %s43 = sphi 0, %s27
    %s47 = sphi 0, %s47
    %s49 = sphi 0, %s47
    %s50 = sphi 0, %s49
    %s64 = sphi 0, %s50
    %s68 = sphi 0, %s68
    %s70 = sphi 0, %s68
    %s71 = sphi 0, %s70
    %s85 = sphi 0, %s71
    %s89 = sphi 0, %s89
    %s91 = sphi 0, %s89
    %s92 = sphi 0, %s91
    %s106 = sphi 0, %s92
    %s110 = sphi 0, %s110
    %s112 = sphi 0, %s110
    %s113 = sphi 0, %s112
    %s127 = sphi 0, %s113
    %s131 = sphi 0, %s131
    %s133 = sphi 0, %s131
    %s134 = sphi 0, %s133
    %s148 = sphi 0, %s134
    %s152 = sphi 0, %s152
    %s154 = sphi 0, %s152
    %s155 = sphi 0, %s154
    %s169 = sphi 0, %s155
    %s175 = sphi 0, %s177
    %s178 = sphi 0, %s175
    %s179 = sphi 0, %s178
    %s195 = sphi 0, %s179
  $region4: #{tpu_custom_call.1} parent=0 // loop_header_branch
    %16 = sbr.rel (%p14) target = $region8
  $region5: #{tpu_custom_call.1} parent=0 // loop_body
    %s18 = ssub.s32 %s13, 1
    %s19 = ssub.s32 %s13, 2
    %s20 = sadd.s32 %s13, 1
    %s21 = ssub.s32 %s13, %s20
    %p22 = scmp.eq.s32.totalorder %s21, 0
    %s24 = sadd.s32 %s23, 1
    %s25 = scalar_select %p22, %s23, %s24
    %p28 = pneg %p22
    %p29 = scmp.eq.s32.totalorder %s13, 1
    %p30 = por %p28, %p29
    %p31 = scmp.ne.s32.totalorder %s23, %s26
    %p32 = scmp.eq.s32.totalorder %s13, 0
    %p33 = por %p31, %p32
    %p34 = scmp.ne.s32.totalorder %s23, %s26
    %p35 = scmp.eq.s32.totalorder %s18, 1
    %p36 = por %p34, %p35
    %p37 = scmp.ne.s32.totalorder %s26, %s27
    %p38 = scmp.eq.s32.totalorder %s18, 0
    %p39 = por %p37, %p38
    %p40 = scmp.ne.s32.totalorder %s26, %s27
    %p41 = scmp.eq.s32.totalorder %s19, 1
    %p42 = por %p40, %p41
    %p44 = scmp.ne.s32.totalorder %s27, %s43
    %p45 = scmp.eq.s32.totalorder %s19, 0
    %p46 = por %p44, %p45
    %s48 = sadd.s32 %s47, 1
    %p51 = scmp.eq.s32.totalorder %s13, 1
    %p52 = scmp.ne.s32.totalorder %s47, %s49
    %p53 = scmp.eq.s32.totalorder %s13, 0
    %p54 = por %p52, %p53
    %p55 = scmp.ne.s32.totalorder %s47, %s49
    %p56 = scmp.eq.s32.totalorder %s18, 1
    %p57 = por %p55, %p56
    %p58 = scmp.ne.s32.totalorder %s49, %s50
    %p59 = scmp.eq.s32.totalorder %s18, 0
    %p60 = por %p58, %p59
    %p61 = scmp.ne.s32.totalorder %s49, %s50
    %p62 = scmp.eq.s32.totalorder %s19, 1
    %p63 = por %p61, %p62
    %p65 = scmp.ne.s32.totalorder %s50, %s64
    %p66 = scmp.eq.s32.totalorder %s19, 0
    %p67 = por %p65, %p66
    %s69 = sadd.s32 %s68, 1
    %p72 = scmp.eq.s32.totalorder %s13, 1
    %p73 = scmp.ne.s32.totalorder %s68, %s70
    %p74 = scmp.eq.s32.totalorder %s13, 0
    %p75 = por %p73, %p74
    %p76 = scmp.ne.s32.totalorder %s68, %s70
    %p77 = scmp.eq.s32.totalorder %s18, 1
    %p78 = por %p76, %p77
    %p79 = scmp.ne.s32.totalorder %s70, %s71
    %p80 = scmp.eq.s32.totalorder %s18, 0
    %p81 = por %p79, %p80
    %p82 = scmp.ne.s32.totalorder %s70, %s71
    %p83 = scmp.eq.s32.totalorder %s19, 1
    %p84 = por %p82, %p83
    %p86 = scmp.ne.s32.totalorder %s71, %s85
    %p87 = scmp.eq.s32.totalorder %s19, 0
    %p88 = por %p86, %p87
    %s90 = sadd.s32 %s89, 1
    %p93 = scmp.eq.s32.totalorder %s13, 1
    %p94 = scmp.ne.s32.totalorder %s89, %s91
    %p95 = scmp.eq.s32.totalorder %s13, 0
    %p96 = por %p94, %p95
    %p97 = scmp.ne.s32.totalorder %s89, %s91
    %p98 = scmp.eq.s32.totalorder %s18, 1
    %p99 = por %p97, %p98
    %p100 = scmp.ne.s32.totalorder %s91, %s92
    %p101 = scmp.eq.s32.totalorder %s18, 0
    %p102 = por %p100, %p101
    %p103 = scmp.ne.s32.totalorder %s91, %s92
    %p104 = scmp.eq.s32.totalorder %s19, 1
    %p105 = por %p103, %p104
    %p107 = scmp.ne.s32.totalorder %s92, %s106
    %p108 = scmp.eq.s32.totalorder %s19, 0
    %p109 = por %p107, %p108
    %s111 = sadd.s32 %s110, 1
    %p114 = scmp.eq.s32.totalorder %s13, 1
    %p115 = scmp.ne.s32.totalorder %s110, %s112
    %p116 = scmp.eq.s32.totalorder %s13, 0
    %p117 = por %p115, %p116
    %p118 = scmp.ne.s32.totalorder %s110, %s112
    %p119 = scmp.eq.s32.totalorder %s18, 1
    %p120 = por %p118, %p119
    %p121 = scmp.ne.s32.totalorder %s112, %s113
    %p122 = scmp.eq.s32.totalorder %s18, 0
    %p123 = por %p121, %p122
    %p124 = scmp.ne.s32.totalorder %s112, %s113
    %p125 = scmp.eq.s32.totalorder %s19, 1
    %p126 = por %p124, %p125
    %p128 = scmp.ne.s32.totalorder %s113, %s127
    %p129 = scmp.eq.s32.totalorder %s19, 0
    %p130 = por %p128, %p129
    %s132 = sadd.s32 %s131, 1
    %p135 = scmp.eq.s32.totalorder %s13, 1
    %p136 = scmp.ne.s32.totalorder %s131, %s133
    %p137 = scmp.eq.s32.totalorder %s13, 0
    %p138 = por %p136, %p137
    %p139 = scmp.ne.s32.totalorder %s131, %s133
    %p140 = scmp.eq.s32.totalorder %s18, 1
    %p141 = por %p139, %p140
    %p142 = scmp.ne.s32.totalorder %s133, %s134
    %p143 = scmp.eq.s32.totalorder %s18, 0
    %p144 = por %p142, %p143
    %p145 = scmp.ne.s32.totalorder %s133, %s134
    %p146 = scmp.eq.s32.totalorder %s19, 1
    %p147 = por %p145, %p146
    %p149 = scmp.ne.s32.totalorder %s134, %s148
    %p150 = scmp.eq.s32.totalorder %s19, 0
    %p151 = por %p149, %p150
    %s153 = sadd.s32 %s152, 1
    %p156 = scmp.eq.s32.totalorder %s13, 1
    %p157 = scmp.ne.s32.totalorder %s152, %s154
    %p158 = scmp.eq.s32.totalorder %s13, 0
    %p159 = por %p157, %p158
    %p160 = scmp.ne.s32.totalorder %s152, %s154
    %p161 = scmp.eq.s32.totalorder %s18, 1
    %p162 = por %p160, %p161
    %p163 = scmp.ne.s32.totalorder %s154, %s155
    %p164 = scmp.eq.s32.totalorder %s18, 0
    %p165 = por %p163, %p164
    %p166 = scmp.ne.s32.totalorder %s154, %s155
    %p167 = scmp.eq.s32.totalorder %s19, 1
    %p168 = por %p166, %p167
    %p170 = scmp.ne.s32.totalorder %s155, %s169
    %p171 = scmp.eq.s32.totalorder %s19, 0
    %p172 = por %p170, %p171
    %s173 = ssub.s32 %s13, %s20
    %p174 = scmp.eq.s32.totalorder %s173, 0
    %s176 = sadd.s32 %s175, 1
    %s177 = scalar_select %p174, %s175, %s176
    %p180 = pneg %p174
    %p181 = scmp.eq.s32.totalorder %s13, 1
    %p182 = por %p180, %p181
    %p183 = scmp.ne.s32.totalorder %s175, %s178
    %p184 = scmp.eq.s32.totalorder %s13, 0
    %p185 = por %p183, %p184
    %p186 = scmp.ne.s32.totalorder %s175, %s178
    %p187 = scmp.eq.s32.totalorder %s18, 1
    %p188 = por %p186, %p187
    %p189 = scmp.ne.s32.totalorder %s178, %s179
    %p190 = scmp.eq.s32.totalorder %s18, 0
    %p191 = por %p189, %p190
    %p192 = scmp.ne.s32.totalorder %s178, %s179
    %p193 = scmp.eq.s32.totalorder %s19, 1
    %p194 = por %p192, %p193
    %p196 = scmp.ne.s32.totalorder %s179, %s195
    %p197 = scmp.eq.s32.totalorder %s19, 0
    %p198 = por %p196, %p197
    %p199 = scmp.le.s32.totalorder 1, %s13
    %p200 = scmp.lt.s32.totalorder %s13, 3
    %p201 = pnand %p199, %p200
    %p202 = pneg %p201
    // Predicated region
    $region9: #{tpu_custom_call.1} parent=5 // pred_check
      _
    $region10: #{tpu_custom_call.1} parent=5 // pred_check_branch
      %204 = sbr.rel (%p201) target = $region12
    $region11: #{tpu_custom_call.1} parent=5 // pred_region
      %s205 = ssub.s32 %s13, 1
      // Predicated region
      $region13: #{tpu_custom_call.1} parent=11 // pred_check
        %p206 = pneg %p60
      $region14: #{tpu_custom_call.1} parent=11 // pred_check_branch
        %208 = sbr.rel (%p206) target = $region16
      $region15: #{tpu_custom_call.1} parent=11 // pred_region
        _
      $region16: #{tpu_custom_call.1} parent=11 // pred_fallthru
        _
      // Predicated region
      $region17: #{tpu_custom_call.1} parent=11 // pred_check
        %p209 = pneg %p81
      $region18: #{tpu_custom_call.1} parent=11 // pred_check_branch
        %211 = sbr.rel (%p209) target = $region20
      $region19: #{tpu_custom_call.1} parent=11 // pred_region
        _
      $region20: #{tpu_custom_call.1} parent=11 // pred_fallthru
        _
      // Predicated region
      $region21: #{tpu_custom_call.1} parent=11 // pred_check
        %p212 = pneg %p102
      $region22: #{tpu_custom_call.1} parent=11 // pred_check_branch
        %214 = sbr.rel (%p212) target = $region24
      $region23: #{tpu_custom_call.1} parent=11 // pred_region
        _
      $region24: #{tpu_custom_call.1} parent=11 // pred_fallthru
        _
      // Predicated region
      $region25: #{tpu_custom_call.1} parent=11 // pred_check
        %p215 = pneg %p123
      $region26: #{tpu_custom_call.1} parent=11 // pred_check_branch
        %217 = sbr.rel (%p215) target = $region28
      $region27: #{tpu_custom_call.1} parent=11 // pred_region
        _
      $region28: #{tpu_custom_call.1} parent=11 // pred_fallthru
        _
      // Predicated region
      $region29: #{tpu_custom_call.1} parent=11 // pred_check
        %p218 = pneg %p144
      $region30: #{tpu_custom_call.1} parent=11 // pred_check_branch
        %220 = sbr.rel (%p218) target = $region32
      $region31: #{tpu_custom_call.1} parent=11 // pred_region
        _
      $region32: #{tpu_custom_call.1} parent=11 // pred_fallthru
        _
      // Predicated region
      $region33: #{tpu_custom_call.1} parent=11 // pred_check
        %p221 = pneg %p165
      $region34: #{tpu_custom_call.1} parent=11 // pred_check_branch
        %223 = sbr.rel (%p221) target = $region36
      $region35: #{tpu_custom_call.1} parent=11 // pred_region
        _
      $region36: #{tpu_custom_call.1} parent=11 // pred_fallthru
        _
    $region12: #{tpu_custom_call.1} parent=5 // pred_fallthru
      _
    %p224 = scmp.lt.s32.totalorder %s13, 2
    // Predicated region
    $region37: #{tpu_custom_call.1} parent=5 // pred_check
      %p225 = pneg %p224
    $region38: #{tpu_custom_call.1} parent=5 // pred_check_branch
      %227 = sbr.rel (%p225) target = $region40
    $region39: #{tpu_custom_call.1} parent=5 // pred_region
      // Predicated region
      $region41: #{tpu_custom_call.1} parent=39 // pred_check
        %p228 = pneg %p33
      $region42: #{tpu_custom_call.1} parent=39 // pred_check_branch
        %230 = sbr.rel (%p228) target = $region44
      $region43: #{tpu_custom_call.1} parent=39 // pred_region
        %s231 = smul.u32 32, %s13
        %p232 = scmp.lt.s32.totalorder %s231, 63
        %s233 = scalar_select %p232, %s231, 63
        %s234 = smul.addr %s233, 8
        %s235 = scalar_lea.vmem %s0, %s234
        %s236 = smul.u32 32, %s13
      $region44: #{tpu_custom_call.1} parent=39 // pred_fallthru
        _
    $region40: #{tpu_custom_call.1} parent=5 // pred_fallthru
      _
    %p237 = scmp.le.s32.totalorder 1, %s13
    %p238 = scmp.lt.s32.totalorder %s13, 3
    %p239 = pnand %p237, %p238
    %p240 = pneg %p239
    // Predicated region
    $region45: #{tpu_custom_call.1} parent=5 // pred_check
      _
    $region46: #{tpu_custom_call.1} parent=5 // pred_check_branch
      %242 = sbr.rel (%p239) target = $region48
    $region47: #{tpu_custom_call.1} parent=5 // pred_region
      %s243 = ssub.s32 %s13, 1
      %s244 = smul.u32 32, %s18
      %p245 = scmp.lt.s32.totalorder %s244, 63
      %s246 = scalar_select %p245, %s244, 63
      %s247 = smul.addr %s246, 8
      %s248 = scalar_lea.vmem %s0, %s247
      %p249 = pneg %p39
      %p250 = pneg %p36
      %p251 = pneg %p60
      %p252 = pneg %p57
      %p253 = pneg %p81
      %p254 = pneg %p78
      %p255 = pneg %p102
      %p256 = pneg %p99
      %p257 = pneg %p123
      %p258 = pneg %p120
      %p259 = pneg %p144
      %p260 = pneg %p141
      %p261 = pneg %p165
      %p262 = pneg %p162
      %p263 = pneg %p191
      %p264 = pneg %p188
      %s265 = smul.u32 32, %s18
      %p266 = scmp.lt.s32.totalorder %s265, 63
      %s267 = scalar_select %p266, %s265, 63
      %s268 = smul.addr %s267, 8
      %s269 = scalar_lea.vmem %s7, %s268
      %s270 = smul.u32 32, %s18
      %p271 = scmp.lt.s32.totalorder %s270, 63
      %s272 = scalar_select %p271, %s270, 63
      %s273 = smul.addr %s272, 8
      %s274 = scalar_lea.vmem %s0, %s273
      %s275 = smul.u32 32, %s18
      %s276 = smul.u32 32, %s18
      %p277 = scmp.lt.s32.totalorder %s276, 63
      %s278 = scalar_select %p277, %s276, 63
      %s279 = smul.addr %s278, 8
      %s280 = scalar_lea.vmem %s7, %s279
      %s281 = smul.u32 32, %s18
      %v283 = vld [vmem:[%s274] sm:$0xff]
      %v284 = vld [vmem:[%s274 + $0x8] sm:$0xff]
      %v285 = vld [vmem:[%s274 + $0x10] sm:$0xff]
      %v286 = vld [vmem:[%s274 + $0x18] sm:$0xff]
      %v287 = vld [vmem:[%s274 + $0x20] sm:$0xff]
      %v288 = vld [vmem:[%s274 + $0x28] sm:$0xff]
      %v289 = vld [vmem:[%s274 + $0x30] sm:$0xff]
      %v290 = vld [vmem:[%s274 + $0x38] sm:$0xff]
      %v291 = vld [vmem:[%s274 + $0x40] sm:$0xff]
      %v292 = vld [vmem:[%s274 + $0x48] sm:$0xff]
      %v293 = vld [vmem:[%s274 + $0x50] sm:$0xff]
      %v294 = vld [vmem:[%s274 + $0x58] sm:$0xff]
      %v295 = vld [vmem:[%s274 + $0x60] sm:$0xff]
      %v296 = vld [vmem:[%s274 + $0x68] sm:$0xff]
      %v297 = vld [vmem:[%s274 + $0x70] sm:$0xff]
      %v298 = vld [vmem:[%s274 + $0x78] sm:$0xff]
      %v299 = vld [vmem:[%s274 + $0x80] sm:$0xff]
      %v300 = vld [vmem:[%s274 + $0x88] sm:$0xff]
      %v301 = vld [vmem:[%s274 + $0x90] sm:$0xff]
      %v302 = vld [vmem:[%s274 + $0x98] sm:$0xff]
      %v303 = vld [vmem:[%s274 + $0xa0] sm:$0xff]
      %v304 = vld [vmem:[%s274 + $0xa8] sm:$0xff]
      %v305 = vld [vmem:[%s274 + $0xb0] sm:$0xff]
      %v306 = vld [vmem:[%s274 + $0xb8] sm:$0xff]
      %v307 = vld [vmem:[%s274 + $0xc0] sm:$0xff]
      %v308 = vld [vmem:[%s274 + $0xc8] sm:$0xff]
      %v309 = vld [vmem:[%s274 + $0xd0] sm:$0xff]
      %v310 = vld [vmem:[%s274 + $0xd8] sm:$0xff]
      %v311 = vld [vmem:[%s274 + $0xe0] sm:$0xff]
      %v312 = vld [vmem:[%s274 + $0xe8] sm:$0xff]
      %v313 = vld [vmem:[%s274 + $0xf0] sm:$0xff]
      %v314 = vld [vmem:[%s274 + $0xf8] sm:$0xff]
      %v315 = vpack.c.bf16 %v284, %v283
      %v316 = vpack.c.bf16 %v286, %v285
      %v317 = vpack.c.bf16 %v288, %v287
      %v318 = vpack.c.bf16 %v290, %v289
      %v319 = vpack.c.bf16 %v292, %v291
      %v320 = vpack.c.bf16 %v294, %v293
      %v321 = vpack.c.bf16 %v296, %v295
      %v322 = vpack.c.bf16 %v298, %v297
      %v323 = vpack.c.bf16 %v300, %v299
      %v324 = vpack.c.bf16 %v302, %v301
      %v325 = vpack.c.bf16 %v304, %v303
      %v326 = vpack.c.bf16 %v306, %v305
      %v327 = vpack.c.bf16 %v308, %v307
      %v328 = vpack.c.bf16 %v310, %v309
      %v329 = vpack.c.bf16 %v312, %v311
      %v330 = vpack.c.bf16 %v314, %v313
      %v331 = vld [vmem:[%s1] sm:$0xf]
      %v332 = vld [vmem:[%s1 + $0x4] sm:$0xf]
      %v333 = vld [vmem:[%s1 + $0x8] sm:$0xf]
      %v334 = vld [vmem:[%s1 + $0xc] sm:$0xf]
      %v335 = vld [vmem:[%s2] sm:$0x1]
      %v337 = vlaneseq
      %v338 = vshrl.u32 %v337, 7
      %v339 = vsub.s32 0, %v338
      %v340 = vrot.slane %v335, %v339
      %v346 = vunpack.c.l.b16 %v331
      %v347 = vunpack.c.l.b16 %v332
      %v348 = vunpack.c.l.b16 %v333
      %v349 = vunpack.c.l.b16 %v334
      %v350 = vpack.c.b16 %v347, %v346
      %v351 = vpack.c.b16 %v349, %v348
      %vm354 = vcmask 261120
      %v356 = vsel %vm354, %v315, 0
      %v359 = vsel %vm354, %v316, 0
      %v362 = vsel %vm354, %v317, 0
      %v365 = vsel %vm354, %v318, 0
      %v368 = vsel %vm354, %v319, 0
      %v371 = vsel %vm354, %v320, 0
      %v374 = vsel %vm354, %v321, 0
      %v377 = vsel %vm354, %v322, 0
      %v380 = vsel %vm354, %v323, 0
      %v383 = vsel %vm354, %v324, 0
      %v386 = vsel %vm354, %v325, 0
      %v389 = vsel %vm354, %v326, 0
      %v392 = vsel %vm354, %v327, 0
      %v395 = vsel %vm354, %v328, 0
      %v398 = vsel %vm354, %v329, 0
      %v401 = vsel %vm354, %v330, 0
      %403 = vmatprep.subr.bf16.mxu0 0
      %404 = vmatpush1.bf16.msra.mxu0 0
      %405 = vmatprep.subr.bf16.mxu0 0
      %406 = vmatpush1.bf16.msra.mxu0 0
      %407 = vmatprep.subr.bf16.mxu0 0
      %408 = vmatpush1.bf16.msra.mxu0 0
      %409 = vmatprep.subr.bf16.mxu0 0
      %410 = vmatpush1.bf16.msra.mxu0 0
      %411 = vmatprep.subr.bf16.mxu0 0
      %412 = vmatpush1.bf16.msra.mxu0 0
      %413 = vmatprep.subr.bf16.mxu0 0
      %414 = vmatpush1.bf16.msra.mxu0 0
      %415 = vmatprep.subr.bf16.mxu0 0
      %416 = vmatpush1.bf16.msra.mxu0 %v351
      %417 = vmatprep.subr.bf16.mxu0 0
      %418 = vmatpush1.bf16.msra.mxu0 %v350
      %419 = vmatprep.subr.bf16.mxu0 0
      %420 = vmatpush2.bf16.msra.mxu0 0
      %421 = vmatprep.subr.bf16.mxu0 0
      %422 = vmatpush2.bf16.msra.mxu0 0
      %423 = vmatprep.subr.bf16.mxu0 0
      %424 = vmatpush2.bf16.msra.mxu0 0
      %425 = vmatprep.subr.bf16.mxu0 0
      %426 = vmatpush2.bf16.msra.mxu0 0
      %427 = vmatprep.subr.bf16.mxu0 0
      %428 = vmatpush2.bf16.msra.mxu0 0
      %429 = vmatprep.subr.bf16.mxu0 0
      %430 = vmatpush2.bf16.msra.mxu0 0
      %431 = vmatprep.subr.bf16.mxu0 0
      %432 = vmatpush2.bf16.msra.mxu0 0
      %433 = vmatprep.subr.bf16.mxu0 0
      %434 = vmatpush2.bf16.msra.mxu0 0
      %435 = vmatprep.mubr.bf16.mxu0 0
      %436 = vmatmul.mubr.bf16.gmra.mxu0 %v356
      %v437 = vpop.f32.mrf.mxu0
      %v438 = vadd.f32 %v340, %v437
      %v439 = vpop.f32.mrf.mxu0
      %v440 = vpop.f32.mrf.mxu0
      %v441 = vadd.f32 %v340, %v440
      %v442 = vpop.f32.mrf.mxu0
      %443 = vmatprep.mubr.bf16.mxu0 0
      %444 = vmatmul.mubr.bf16.gmra.mxu0 %v359
      %v445 = vpop.f32.mrf.mxu0
      %v446 = vadd.f32 %v340, %v445
      %v447 = vpop.f32.mrf.mxu0
      %v448 = vpop.f32.mrf.mxu0
      %v449 = vadd.f32 %v340, %v448
      %v450 = vpop.f32.mrf.mxu0
      %451 = vmatprep.mubr.bf16.mxu0 0
      %452 = vmatmul.mubr.bf16.gmra.mxu0 %v362
      %v453 = vpop.f32.mrf.mxu0
      %v454 = vadd.f32 %v340, %v453
      %v455 = vpop.f32.mrf.mxu0
      %v456 = vpop.f32.mrf.mxu0
      %v457 = vadd.f32 %v340, %v456
      %v458 = vpop.f32.mrf.mxu0
      %459 = vmatprep.mubr.bf16.mxu0 0
      %460 = vmatmul.mubr.bf16.gmra.mxu0 %v365
      %v461 = vpop.f32.mrf.mxu0
      %v462 = vadd.f32 %v340, %v461
      %v463 = vpop.f32.mrf.mxu0
      %v464 = vpop.f32.mrf.mxu0
      %v465 = vadd.f32 %v340, %v464
      %v466 = vpop.f32.mrf.mxu0
      %467 = vmatprep.mubr.bf16.mxu0 0
      %468 = vmatmul.mubr.bf16.gmra.mxu0 %v368
      %v469 = vpop.f32.mrf.mxu0
      %v470 = vadd.f32 %v340, %v469
      %v471 = vpop.f32.mrf.mxu0
      %v472 = vpop.f32.mrf.mxu0
      %v473 = vadd.f32 %v340, %v472
      %v474 = vpop.f32.mrf.mxu0
      %475 = vmatprep.mubr.bf16.mxu0 0
      %476 = vmatmul.mubr.bf16.gmra.mxu0 %v371
      %v477 = vpop.f32.mrf.mxu0
      %v478 = vadd.f32 %v340, %v477
      %v479 = vpop.f32.mrf.mxu0
      %v480 = vpop.f32.mrf.mxu0
      %v481 = vadd.f32 %v340, %v480
      %v482 = vpop.f32.mrf.mxu0
      %483 = vmatprep.mubr.bf16.mxu0 0
      %484 = vmatmul.mubr.bf16.gmra.mxu0 %v374
      %v485 = vpop.f32.mrf.mxu0
      %v486 = vadd.f32 %v340, %v485
      %v487 = vpop.f32.mrf.mxu0
      %v488 = vpop.f32.mrf.mxu0
      %v489 = vadd.f32 %v340, %v488
      %v490 = vpop.f32.mrf.mxu0
      %491 = vmatprep.mubr.bf16.mxu0 0
      %492 = vmatmul.mubr.bf16.gmra.mxu0 %v377
      %v493 = vpop.f32.mrf.mxu0
      %v494 = vadd.f32 %v340, %v493
      %v495 = vpop.f32.mrf.mxu0
      %v496 = vpop.f32.mrf.mxu0
      %v497 = vadd.f32 %v340, %v496
      %v498 = vpop.f32.mrf.mxu0
      %499 = vmatprep.mubr.bf16.mxu0 0
      %500 = vmatmul.mubr.bf16.gmra.mxu0 %v380
      %v501 = vpop.f32.mrf.mxu0
      %v502 = vadd.f32 %v340, %v501
      %v503 = vpop.f32.mrf.mxu0
      %v504 = vpop.f32.mrf.mxu0
      %v505 = vadd.f32 %v340, %v504
      %v506 = vpop.f32.mrf.mxu0
      %507 = vmatprep.mubr.bf16.mxu0 0
      %508 = vmatmul.mubr.bf16.gmra.mxu0 %v383
      %v509 = vpop.f32.mrf.mxu0
      %v510 = vadd.f32 %v340, %v509
      %v511 = vpop.f32.mrf.mxu0
      %v512 = vpop.f32.mrf.mxu0
      %v513 = vadd.f32 %v340, %v512
      %v514 = vpop.f32.mrf.mxu0
      %515 = vmatprep.mubr.bf16.mxu0 0
      %516 = vmatmul.mubr.bf16.gmra.mxu0 %v386
      %v517 = vpop.f32.mrf.mxu0
      %v518 = vadd.f32 %v340, %v517
      %v519 = vpop.f32.mrf.mxu0
      %v520 = vpop.f32.mrf.mxu0
      %v521 = vadd.f32 %v340, %v520
      %v522 = vpop.f32.mrf.mxu0
      %523 = vmatprep.mubr.bf16.mxu0 0
      %524 = vmatmul.mubr.bf16.gmra.mxu0 %v389
      %v525 = vpop.f32.mrf.mxu0
      %v526 = vadd.f32 %v340, %v525
      %v527 = vpop.f32.mrf.mxu0
      %v528 = vpop.f32.mrf.mxu0
      %v529 = vadd.f32 %v340, %v528
      %v530 = vpop.f32.mrf.mxu0
      %531 = vmatprep.mubr.bf16.mxu0 0
      %532 = vmatmul.mubr.bf16.gmra.mxu0 %v392
      %v533 = vpop.f32.mrf.mxu0
      %v534 = vadd.f32 %v340, %v533
      %v535 = vpop.f32.mrf.mxu0
      %v536 = vpop.f32.mrf.mxu0
      %v537 = vadd.f32 %v340, %v536
      %v538 = vpop.f32.mrf.mxu0
      %539 = vmatprep.mubr.bf16.mxu0 0
      %540 = vmatmul.mubr.bf16.gmra.mxu0 %v395
      %v541 = vpop.f32.mrf.mxu0
      %v542 = vadd.f32 %v340, %v541
      %v543 = vpop.f32.mrf.mxu0
      %v544 = vpop.f32.mrf.mxu0
      %v545 = vadd.f32 %v340, %v544
      %v546 = vpop.f32.mrf.mxu0
      %547 = vmatprep.mubr.bf16.mxu0 0
      %548 = vmatmul.mubr.bf16.gmra.mxu0 %v398
      %v549 = vpop.f32.mrf.mxu0
      %v550 = vadd.f32 %v340, %v549
      %v551 = vpop.f32.mrf.mxu0
      %v552 = vpop.f32.mrf.mxu0
      %v553 = vadd.f32 %v340, %v552
      %v554 = vpop.f32.mrf.mxu0
      %555 = vmatprep.mubr.bf16.mxu0 0
      %556 = vmatmul.mubr.bf16.gmra.mxu0 %v401
      %v557 = vpop.f32.mrf.mxu0
      %v558 = vadd.f32 %v340, %v557
      %v559 = vpop.f32.mrf.mxu0
      %v560 = vpop.f32.mrf.mxu0
      %v561 = vadd.f32 %v340, %v560
      %v562 = vpop.f32.mrf.mxu0
      %563 = vdwg.mxu0
      %vm564 = vcmp.ge.f32.partialorder %v438, 0.0
      %vm565 = vcmp.ge.f32.partialorder %v441, 0.0
      %vm566 = vcmp.ge.f32.partialorder %v446, 0.0
      %vm567 = vcmp.ge.f32.partialorder %v449, 0.0
      %vm568 = vcmp.ge.f32.partialorder %v454, 0.0
      %vm569 = vcmp.ge.f32.partialorder %v457, 0.0
      %vm570 = vcmp.ge.f32.partialorder %v462, 0.0
      %vm571 = vcmp.ge.f32.partialorder %v465, 0.0
      %vm572 = vcmp.ge.f32.partialorder %v470, 0.0
      %vm573 = vcmp.ge.f32.partialorder %v473, 0.0
      %vm574 = vcmp.ge.f32.partialorder %v478, 0.0
      %vm575 = vcmp.ge.f32.partialorder %v481, 0.0
      %vm576 = vcmp.ge.f32.partialorder %v486, 0.0
      %vm577 = vcmp.ge.f32.partialorder %v489, 0.0
      %vm578 = vcmp.ge.f32.partialorder %v494, 0.0
      %vm579 = vcmp.ge.f32.partialorder %v497, 0.0
      %vm580 = vcmp.ge.f32.partialorder %v502, 0.0
      %vm581 = vcmp.ge.f32.partialorder %v505, 0.0
      %vm582 = vcmp.ge.f32.partialorder %v510, 0.0
      %vm583 = vcmp.ge.f32.partialorder %v513, 0.0
      %vm584 = vcmp.ge.f32.partialorder %v518, 0.0
      %vm585 = vcmp.ge.f32.partialorder %v521, 0.0
      %vm586 = vcmp.ge.f32.partialorder %v526, 0.0
      %vm587 = vcmp.ge.f32.partialorder %v529, 0.0
      %vm588 = vcmp.ge.f32.partialorder %v534, 0.0
      %vm589 = vcmp.ge.f32.partialorder %v537, 0.0
      %vm590 = vcmp.ge.f32.partialorder %v542, 0.0
      %vm591 = vcmp.ge.f32.partialorder %v545, 0.0
      %vm592 = vcmp.ge.f32.partialorder %v550, 0.0
      %vm593 = vcmp.ge.f32.partialorder %v553, 0.0
      %vm594 = vcmp.ge.f32.partialorder %v558, 0.0
      %vm595 = vcmp.ge.f32.partialorder %v561, 0.0
      %v596 = vmul.f32 %v438, 0.01
      %v597 = vmul.f32 %v441, 0.01
      %v598 = vmul.f32 %v446, 0.01
      %v599 = vmul.f32 %v449, 0.01
      %v600 = vmul.f32 %v454, 0.01
      %v601 = vmul.f32 %v457, 0.01
      %v602 = vmul.f32 %v462, 0.01
      %v603 = vmul.f32 %v465, 0.01
      %v604 = vmul.f32 %v470, 0.01
      %v605 = vmul.f32 %v473, 0.01
      %v606 = vmul.f32 %v478, 0.01
      %v607 = vmul.f32 %v481, 0.01
      %v608 = vmul.f32 %v486, 0.01
      %v609 = vmul.f32 %v489, 0.01
      %v610 = vmul.f32 %v494, 0.01
      %v611 = vmul.f32 %v497, 0.01
      %v612 = vmul.f32 %v502, 0.01
      %v613 = vmul.f32 %v505, 0.01
      %v614 = vmul.f32 %v510, 0.01
      %v615 = vmul.f32 %v513, 0.01
      %v616 = vmul.f32 %v518, 0.01
      %v617 = vmul.f32 %v521, 0.01
      %v618 = vmul.f32 %v526, 0.01
      %v619 = vmul.f32 %v529, 0.01
      %v620 = vmul.f32 %v534, 0.01
      %v621 = vmul.f32 %v537, 0.01
      %v622 = vmul.f32 %v542, 0.01
      %v623 = vmul.f32 %v545, 0.01
      %v624 = vmul.f32 %v550, 0.01
      %v625 = vmul.f32 %v553, 0.01
      %v626 = vmul.f32 %v558, 0.01
      %v627 = vmul.f32 %v561, 0.01
      %v628 = vsel %vm564, %v438, %v596
      %v629 = vsel %vm565, %v441, %v597
      %v630 = vsel %vm566, %v446, %v598
      %v631 = vsel %vm567, %v449, %v599
      %v632 = vsel %vm568, %v454, %v600
      %v633 = vsel %vm569, %v457, %v601
      %v634 = vsel %vm570, %v462, %v602
      %v635 = vsel %vm571, %v465, %v603
      %v636 = vsel %vm572, %v470, %v604
      %v637 = vsel %vm573, %v473, %v605
      %v638 = vsel %vm574, %v478, %v606
      %v639 = vsel %vm575, %v481, %v607
      %v640 = vsel %vm576, %v486, %v608
      %v641 = vsel %vm577, %v489, %v609
      %v642 = vsel %vm578, %v494, %v610
      %v643 = vsel %vm579, %v497, %v611
      %v644 = vsel %vm580, %v502, %v612
      %v645 = vsel %vm581, %v505, %v613
      %v646 = vsel %vm582, %v510, %v614
      %v647 = vsel %vm583, %v513, %v615
      %v648 = vsel %vm584, %v518, %v616
      %v649 = vsel %vm585, %v521, %v617
      %v650 = vsel %vm586, %v526, %v618
      %v651 = vsel %vm587, %v529, %v619
      %v652 = vsel %vm588, %v534, %v620
      %v653 = vsel %vm589, %v537, %v621
      %v654 = vsel %vm590, %v542, %v622
      %v655 = vsel %vm591, %v545, %v623
      %v656 = vsel %vm592, %v550, %v624
      %v657 = vsel %vm593, %v553, %v625
      %v658 = vsel %vm594, %v558, %v626
      %v659 = vsel %vm595, %v561, %v627
      %v660 = vpack.c.bf16 %v629, %v628
      %v661 = vpack.c.bf16 %v631, %v630
      %v662 = vpack.c.bf16 %v633, %v632
      %v663 = vpack.c.bf16 %v635, %v634
      %v664 = vpack.c.bf16 %v637, %v636
      %v665 = vpack.c.bf16 %v639, %v638
      %v666 = vpack.c.bf16 %v641, %v640
      %v667 = vpack.c.bf16 %v643, %v642
      %v668 = vpack.c.bf16 %v645, %v644
      %v669 = vpack.c.bf16 %v647, %v646
      %v670 = vpack.c.bf16 %v649, %v648
      %v671 = vpack.c.bf16 %v651, %v650
      %v672 = vpack.c.bf16 %v653, %v652
      %v673 = vpack.c.bf16 %v655, %v654
      %v674 = vpack.c.bf16 %v657, %v656
      %v675 = vpack.c.bf16 %v659, %v658
      %v676 = vld [vmem:[%s3] sm:$0xf]
      %v677 = vld [vmem:[%s3 + $0x4] sm:$0xf]
      %v678 = vld [vmem:[%s3 + $0x8] sm:$0xf]
      %v679 = vld [vmem:[%s3 + $0xc] sm:$0xf]
      %v680 = vld [vmem:[%s3 + $0x10] sm:$0xf]
      %v681 = vld [vmem:[%s3 + $0x14] sm:$0xf]
      %v682 = vld [vmem:[%s3 + $0x18] sm:$0xf]
      %v683 = vld [vmem:[%s3 + $0x1c] sm:$0xf]
      %v684 = vld [vmem:[%s3 + $0x20] sm:$0xf]
      %v685 = vld [vmem:[%s3 + $0x24] sm:$0xf]
      %v686 = vld [vmem:[%s3 + $0x28] sm:$0xf]
      %v687 = vld [vmem:[%s3 + $0x2c] sm:$0xf]
      %v688 = vld [vmem:[%s3 + $0x30] sm:$0xf]
      %v689 = vld [vmem:[%s3 + $0x34] sm:$0xf]
      %v690 = vld [vmem:[%s3 + $0x38] sm:$0xf]
      %v691 = vld [vmem:[%s3 + $0x3c] sm:$0xf]
      %v692 = vld [vmem:[%s4] sm:$0x1]
      %v694 = vlaneseq
      %v695 = vshrl.u32 %v694, 7
      %v696 = vsub.s32 0, %v695
      %v697 = vrot.slane %v692, %v696
      %v715 = vunpack.c.l.b16 %v676
      %v716 = vunpack.c.l.b16 %v677
      %v717 = vunpack.c.l.b16 %v678
      %v718 = vunpack.c.l.b16 %v679
      %v719 = vunpack.c.l.b16 %v680
      %v720 = vunpack.c.l.b16 %v681
      %v721 = vunpack.c.l.b16 %v682
      %v722 = vunpack.c.l.b16 %v683
      %v723 = vunpack.c.l.b16 %v684
      %v724 = vunpack.c.l.b16 %v685
      %v725 = vunpack.c.l.b16 %v686
      %v726 = vunpack.c.l.b16 %v687
      %v727 = vunpack.c.l.b16 %v688
      %v728 = vunpack.c.l.b16 %v689
      %v729 = vunpack.c.l.b16 %v690
      %v730 = vunpack.c.l.b16 %v691
      %v731 = vpack.c.b16 %v716, %v715
      %v732 = vpack.c.b16 %v718, %v717
      %v733 = vpack.c.b16 %v720, %v719
      %v734 = vpack.c.b16 %v722, %v721
      %v735 = vpack.c.b16 %v724, %v723
      %v736 = vpack.c.b16 %v726, %v725
      %v737 = vpack.c.b16 %v728, %v727
      %v738 = vpack.c.b16 %v730, %v729
      %747 = vmatprep.subr.bf16.mxu0 0
      %748 = vmatpush1.bf16.msra.mxu0 %v738
      %749 = vmatprep.subr.bf16.mxu0 0
      %750 = vmatpush1.bf16.msra.mxu0 %v737
      %751 = vmatprep.subr.bf16.mxu0 0
      %752 = vmatpush1.bf16.msra.mxu0 %v736
      %753 = vmatprep.subr.bf16.mxu0 0
      %754 = vmatpush1.bf16.msra.mxu0 %v735
      %755 = vmatprep.subr.bf16.mxu0 0
      %756 = vmatpush1.bf16.msra.mxu0 %v734
      %757 = vmatprep.subr.bf16.mxu0 0
      %758 = vmatpush1.bf16.msra.mxu0 %v733
      %759 = vmatprep.subr.bf16.mxu0 0
      %760 = vmatpush1.bf16.msra.mxu0 %v732
      %761 = vmatprep.subr.bf16.mxu0 0
      %762 = vmatpush1.bf16.msra.mxu0 %v731
      %763 = vmatprep.subr.bf16.mxu0 0
      %764 = vmatpush2.bf16.msra.mxu0 0
      %765 = vmatprep.subr.bf16.mxu0 0
      %766 = vmatpush2.bf16.msra.mxu0 0
      %767 = vmatprep.subr.bf16.mxu0 0
      %768 = vmatpush2.bf16.msra.mxu0 0
      %769 = vmatprep.subr.bf16.mxu0 0
      %770 = vmatpush2.bf16.msra.mxu0 0
      %771 = vmatprep.subr.bf16.mxu0 0
      %772 = vmatpush2.bf16.msra.mxu0 0
      %773 = vmatprep.subr.bf16.mxu0 0
      %774 = vmatpush2.bf16.msra.mxu0 0
      %775 = vmatprep.subr.bf16.mxu0 0
      %776 = vmatpush2.bf16.msra.mxu0 0
      %777 = vmatprep.subr.bf16.mxu0 0
      %778 = vmatpush2.bf16.msra.mxu0 0
      %779 = vmatprep.mubr.bf16.mxu0 0
      %780 = vmatmul.mubr.bf16.gmra.mxu0 %v660
      %v781 = vpop.f32.mrf.mxu0
      %v782 = vadd.f32 %v697, %v781
      %v783 = vpop.f32.mrf.mxu0
      %v784 = vpop.f32.mrf.mxu0
      %v785 = vadd.f32 %v697, %v784
      %v786 = vpop.f32.mrf.mxu0
      %787 = vmatprep.mubr.bf16.mxu0 0
      %788 = vmatmul.mubr.bf16.gmra.mxu0 %v661
      %v789 = vpop.f32.mrf.mxu0
      %v790 = vadd.f32 %v697, %v789
      %v791 = vpop.f32.mrf.mxu0
      %v792 = vpop.f32.mrf.mxu0
      %v793 = vadd.f32 %v697, %v792
      %v794 = vpop.f32.mrf.mxu0
      %795 = vmatprep.mubr.bf16.mxu0 0
      %796 = vmatmul.mubr.bf16.gmra.mxu0 %v662
      %v797 = vpop.f32.mrf.mxu0
      %v798 = vadd.f32 %v697, %v797
      %v799 = vpop.f32.mrf.mxu0
      %v800 = vpop.f32.mrf.mxu0
      %v801 = vadd.f32 %v697, %v800
      %v802 = vpop.f32.mrf.mxu0
      %803 = vmatprep.mubr.bf16.mxu0 0
      %804 = vmatmul.mubr.bf16.gmra.mxu0 %v663
      %v805 = vpop.f32.mrf.mxu0
      %v806 = vadd.f32 %v697, %v805
      %v807 = vpop.f32.mrf.mxu0
      %v808 = vpop.f32.mrf.mxu0
      %v809 = vadd.f32 %v697, %v808
      %v810 = vpop.f32.mrf.mxu0
      %811 = vmatprep.mubr.bf16.mxu0 0
      %812 = vmatmul.mubr.bf16.gmra.mxu0 %v664
      %v813 = vpop.f32.mrf.mxu0
      %v814 = vadd.f32 %v697, %v813
      %v815 = vpop.f32.mrf.mxu0
      %v816 = vpop.f32.mrf.mxu0
      %v817 = vadd.f32 %v697, %v816
      %v818 = vpop.f32.mrf.mxu0
      %819 = vmatprep.mubr.bf16.mxu0 0
      %820 = vmatmul.mubr.bf16.gmra.mxu0 %v665
      %v821 = vpop.f32.mrf.mxu0
      %v822 = vadd.f32 %v697, %v821
      %v823 = vpop.f32.mrf.mxu0
      %v824 = vpop.f32.mrf.mxu0
      %v825 = vadd.f32 %v697, %v824
      %v826 = vpop.f32.mrf.mxu0
      %827 = vmatprep.mubr.bf16.mxu0 0
      %828 = vmatmul.mubr.bf16.gmra.mxu0 %v666
      %v829 = vpop.f32.mrf.mxu0
      %v830 = vadd.f32 %v697, %v829
      %v831 = vpop.f32.mrf.mxu0
      %v832 = vpop.f32.mrf.mxu0
      %v833 = vadd.f32 %v697, %v832
      %v834 = vpop.f32.mrf.mxu0
      %835 = vmatprep.mubr.bf16.mxu0 0
      %836 = vmatmul.mubr.bf16.gmra.mxu0 %v667
      %v837 = vpop.f32.mrf.mxu0
      %v838 = vadd.f32 %v697, %v837
      %v839 = vpop.f32.mrf.mxu0
      %v840 = vpop.f32.mrf.mxu0
      %v841 = vadd.f32 %v697, %v840
      %v842 = vpop.f32.mrf.mxu0
      %843 = vmatprep.mubr.bf16.mxu0 0
      %844 = vmatmul.mubr.bf16.gmra.mxu0 %v668
      %v845 = vpop.f32.mrf.mxu0
      %v846 = vadd.f32 %v697, %v845
      %v847 = vpop.f32.mrf.mxu0
      %v848 = vpop.f32.mrf.mxu0
      %v849 = vadd.f32 %v697, %v848
      %v850 = vpop.f32.mrf.mxu0
      %851 = vmatprep.mubr.bf16.mxu0 0
      %852 = vmatmul.mubr.bf16.gmra.mxu0 %v669
      %v853 = vpop.f32.mrf.mxu0
      %v854 = vadd.f32 %v697, %v853
      %v855 = vpop.f32.mrf.mxu0
      %v856 = vpop.f32.mrf.mxu0
      %v857 = vadd.f32 %v697, %v856
      %v858 = vpop.f32.mrf.mxu0
      %859 = vmatprep.mubr.bf16.mxu0 0
      %860 = vmatmul.mubr.bf16.gmra.mxu0 %v670
      %v861 = vpop.f32.mrf.mxu0
      %v862 = vadd.f32 %v697, %v861
      %v863 = vpop.f32.mrf.mxu0
      %v864 = vpop.f32.mrf.mxu0
      %v865 = vadd.f32 %v697, %v864
      %v866 = vpop.f32.mrf.mxu0
      %867 = vmatprep.mubr.bf16.mxu0 0
      %868 = vmatmul.mubr.bf16.gmra.mxu0 %v671
      %v869 = vpop.f32.mrf.mxu0
      %v870 = vadd.f32 %v697, %v869
      %v871 = vpop.f32.mrf.mxu0
      %v872 = vpop.f32.mrf.mxu0
      %v873 = vadd.f32 %v697, %v872
      %v874 = vpop.f32.mrf.mxu0
      %875 = vmatprep.mubr.bf16.mxu0 0
      %876 = vmatmul.mubr.bf16.gmra.mxu0 %v672
      %v877 = vpop.f32.mrf.mxu0
      %v878 = vadd.f32 %v697, %v877
      %v879 = vpop.f32.mrf.mxu0
      %v880 = vpop.f32.mrf.mxu0
      %v881 = vadd.f32 %v697, %v880
      %v882 = vpop.f32.mrf.mxu0
      %883 = vmatprep.mubr.bf16.mxu0 0
      %884 = vmatmul.mubr.bf16.gmra.mxu0 %v673
      %v885 = vpop.f32.mrf.mxu0
      %v886 = vadd.f32 %v697, %v885
      %v887 = vpop.f32.mrf.mxu0
      %v888 = vpop.f32.mrf.mxu0
      %v889 = vadd.f32 %v697, %v888
      %v890 = vpop.f32.mrf.mxu0
      %891 = vmatprep.mubr.bf16.mxu0 0
      %892 = vmatmul.mubr.bf16.gmra.mxu0 %v674
      %v893 = vpop.f32.mrf.mxu0
      %v894 = vadd.f32 %v697, %v893
      %v895 = vpop.f32.mrf.mxu0
      %v896 = vpop.f32.mrf.mxu0
      %v897 = vadd.f32 %v697, %v896
      %v898 = vpop.f32.mrf.mxu0
      %899 = vmatprep.mubr.bf16.mxu0 0
      %900 = vmatmul.mubr.bf16.gmra.mxu0 %v675
      %v901 = vpop.f32.mrf.mxu0
      %v902 = vadd.f32 %v697, %v901
      %v903 = vpop.f32.mrf.mxu0
      %v904 = vpop.f32.mrf.mxu0
      %v905 = vadd.f32 %v697, %v904
      %v906 = vpop.f32.mrf.mxu0
      %907 = vdwg.mxu0
      %vm908 = vcmp.ge.f32.partialorder %v782, 0.0
      %vm909 = vcmp.ge.f32.partialorder %v785, 0.0
      %vm910 = vcmp.ge.f32.partialorder %v790, 0.0
      %vm911 = vcmp.ge.f32.partialorder %v793, 0.0
      %vm912 = vcmp.ge.f32.partialorder %v798, 0.0
      %vm913 = vcmp.ge.f32.partialorder %v801, 0.0
      %vm914 = vcmp.ge.f32.partialorder %v806, 0.0
      %vm915 = vcmp.ge.f32.partialorder %v809, 0.0
      %vm916 = vcmp.ge.f32.partialorder %v814, 0.0
      %vm917 = vcmp.ge.f32.partialorder %v817, 0.0
      %vm918 = vcmp.ge.f32.partialorder %v822, 0.0
      %vm919 = vcmp.ge.f32.partialorder %v825, 0.0
      %vm920 = vcmp.ge.f32.partialorder %v830, 0.0
      %vm921 = vcmp.ge.f32.partialorder %v833, 0.0
      %vm922 = vcmp.ge.f32.partialorder %v838, 0.0
      %vm923 = vcmp.ge.f32.partialorder %v841, 0.0
      %vm924 = vcmp.ge.f32.partialorder %v846, 0.0
      %vm925 = vcmp.ge.f32.partialorder %v849, 0.0
      %vm926 = vcmp.ge.f32.partialorder %v854, 0.0
      %vm927 = vcmp.ge.f32.partialorder %v857, 0.0
      %vm928 = vcmp.ge.f32.partialorder %v862, 0.0
      %vm929 = vcmp.ge.f32.partialorder %v865, 0.0
      %vm930 = vcmp.ge.f32.partialorder %v870, 0.0
      %vm931 = vcmp.ge.f32.partialorder %v873, 0.0
      %vm932 = vcmp.ge.f32.partialorder %v878, 0.0
      %vm933 = vcmp.ge.f32.partialorder %v881, 0.0
      %vm934 = vcmp.ge.f32.partialorder %v886, 0.0
      %vm935 = vcmp.ge.f32.partialorder %v889, 0.0
      %vm936 = vcmp.ge.f32.partialorder %v894, 0.0
      %vm937 = vcmp.ge.f32.partialorder %v897, 0.0
      %vm938 = vcmp.ge.f32.partialorder %v902, 0.0
      %vm939 = vcmp.ge.f32.partialorder %v905, 0.0
      %v940 = vmul.f32 %v782, 0.01
      %v941 = vmul.f32 %v785, 0.01
      %v942 = vmul.f32 %v790, 0.01
      %v943 = vmul.f32 %v793, 0.01
      %v944 = vmul.f32 %v798, 0.01
      %v945 = vmul.f32 %v801, 0.01
      %v946 = vmul.f32 %v806, 0.01
      %v947 = vmul.f32 %v809, 0.01
      %v948 = vmul.f32 %v814, 0.01
      %v949 = vmul.f32 %v817, 0.01
      %v950 = vmul.f32 %v822, 0.01
      %v951 = vmul.f32 %v825, 0.01
      %v952 = vmul.f32 %v830, 0.01
      %v953 = vmul.f32 %v833, 0.01
      %v954 = vmul.f32 %v838, 0.01
      %v955 = vmul.f32 %v841, 0.01
      %v956 = vmul.f32 %v846, 0.01
      %v957 = vmul.f32 %v849, 0.01
      %v958 = vmul.f32 %v854, 0.01
      %v959 = vmul.f32 %v857, 0.01
      %v960 = vmul.f32 %v862, 0.01
      %v961 = vmul.f32 %v865, 0.01
      %v962 = vmul.f32 %v870, 0.01
      %v963 = vmul.f32 %v873, 0.01
      %v964 = vmul.f32 %v878, 0.01
      %v965 = vmul.f32 %v881, 0.01
      %v966 = vmul.f32 %v886, 0.01
      %v967 = vmul.f32 %v889, 0.01
      %v968 = vmul.f32 %v894, 0.01
      %v969 = vmul.f32 %v897, 0.01
      %v970 = vmul.f32 %v902, 0.01
      %v971 = vmul.f32 %v905, 0.01
      %v972 = vsel %vm908, %v782, %v940
      %v973 = vsel %vm909, %v785, %v941
      %v974 = vsel %vm910, %v790, %v942
      %v975 = vsel %vm911, %v793, %v943
      %v976 = vsel %vm912, %v798, %v944
      %v977 = vsel %vm913, %v801, %v945
      %v978 = vsel %vm914, %v806, %v946
      %v979 = vsel %vm915, %v809, %v947
      %v980 = vsel %vm916, %v814, %v948
      %v981 = vsel %vm917, %v817, %v949
      %v982 = vsel %vm918, %v822, %v950
      %v983 = vsel %vm919, %v825, %v951
      %v984 = vsel %vm920, %v830, %v952
      %v985 = vsel %vm921, %v833, %v953
      %v986 = vsel %vm922, %v838, %v954
      %v987 = vsel %vm923, %v841, %v955
      %v988 = vsel %vm924, %v846, %v956
      %v989 = vsel %vm925, %v849, %v957
      %v990 = vsel %vm926, %v854, %v958
      %v991 = vsel %vm927, %v857, %v959
      %v992 = vsel %vm928, %v862, %v960
      %v993 = vsel %vm929, %v865, %v961
      %v994 = vsel %vm930, %v870, %v962
      %v995 = vsel %vm931, %v873, %v963
      %v996 = vsel %vm932, %v878, %v964
      %v997 = vsel %vm933, %v881, %v965
      %v998 = vsel %vm934, %v886, %v966
      %v999 = vsel %vm935, %v889, %v967
      %v1000 = vsel %vm936, %v894, %v968
      %v1001 = vsel %vm937, %v897, %v969
      %v1002 = vsel %vm938, %v902, %v970
      %v1003 = vsel %vm939, %v905, %v971
      %v1004 = vpack.c.bf16 %v973, %v972
      %v1005 = vpack.c.bf16 %v975, %v974
      %v1006 = vpack.c.bf16 %v977, %v976
      %v1007 = vpack.c.bf16 %v979, %v978
      %v1008 = vpack.c.bf16 %v981, %v980
      %v1009 = vpack.c.bf16 %v983, %v982
      %v1010 = vpack.c.bf16 %v985, %v984
      %v1011 = vpack.c.bf16 %v987, %v986
      %v1012 = vpack.c.bf16 %v989, %v988
      %v1013 = vpack.c.bf16 %v991, %v990
      %v1014 = vpack.c.bf16 %v993, %v992
      %v1015 = vpack.c.bf16 %v995, %v994
      %v1016 = vpack.c.bf16 %v997, %v996
      %v1017 = vpack.c.bf16 %v999, %v998
      %v1018 = vpack.c.bf16 %v1001, %v1000
      %v1019 = vpack.c.bf16 %v1003, %v1002
      %v1020 = vld [vmem:[%s5] sm:$0xf]
      %v1021 = vld [vmem:[%s5 + $0x4] sm:$0xf]
      %v1022 = vld [vmem:[%s5 + $0x8] sm:$0xf]
      %v1023 = vld [vmem:[%s5 + $0xc] sm:$0xf]
      %v1024 = vld [vmem:[%s5 + $0x10] sm:$0xf]
      %v1025 = vld [vmem:[%s5 + $0x14] sm:$0xf]
      %v1026 = vld [vmem:[%s5 + $0x18] sm:$0xf]
      %v1027 = vld [vmem:[%s5 + $0x1c] sm:$0xf]
      %v1028 = vld [vmem:[%s5 + $0x20] sm:$0xf]
      %v1029 = vld [vmem:[%s5 + $0x24] sm:$0xf]
      %v1030 = vld [vmem:[%s5 + $0x28] sm:$0xf]
      %v1031 = vld [vmem:[%s5 + $0x2c] sm:$0xf]
      %v1032 = vld [vmem:[%s5 + $0x30] sm:$0xf]
      %v1033 = vld [vmem:[%s5 + $0x34] sm:$0xf]
      %v1034 = vld [vmem:[%s5 + $0x38] sm:$0xf]
      %v1035 = vld [vmem:[%s5 + $0x3c] sm:$0xf]
      %v1036 = vld [vmem:[%s6] sm:$0x1]
      %v1038 = vlaneseq
      %v1039 = vshrl.u32 %v1038, 7
      %v1040 = vsub.s32 0, %v1039
      %v1041 = vrot.slane %v1036, %v1040
      %v1059 = vunpack.c.l.b16 %v1020
      %v1060 = vunpack.c.l.b16 %v1021
      %v1061 = vunpack.c.l.b16 %v1022
      %v1062 = vunpack.c.l.b16 %v1023
      %v1063 = vunpack.c.l.b16 %v1024
      %v1064 = vunpack.c.l.b16 %v1025
      %v1065 = vunpack.c.l.b16 %v1026
      %v1066 = vunpack.c.l.b16 %v1027
      %v1067 = vunpack.c.l.b16 %v1028
      %v1068 = vunpack.c.l.b16 %v1029
      %v1069 = vunpack.c.l.b16 %v1030
      %v1070 = vunpack.c.l.b16 %v1031
      %v1071 = vunpack.c.l.b16 %v1032
      %v1072 = vunpack.c.l.b16 %v1033
      %v1073 = vunpack.c.l.b16 %v1034
      %v1074 = vunpack.c.l.b16 %v1035
      %v1075 = vpack.c.b16 %v1060, %v1059
      %v1076 = vpack.c.b16 %v1062, %v1061
      %v1077 = vpack.c.b16 %v1064, %v1063
      %v1078 = vpack.c.b16 %v1066, %v1065
      %v1079 = vpack.c.b16 %v1068, %v1067
      %v1080 = vpack.c.b16 %v1070, %v1069
      %v1081 = vpack.c.b16 %v1072, %v1071
      %v1082 = vpack.c.b16 %v1074, %v1073
      %1091 = vmatprep.subr.bf16.mxu0 0
      %1092 = vmatpush1.bf16.msra.mxu0 %v1082
      %1093 = vmatprep.subr.bf16.mxu0 0
      %1094 = vmatpush1.bf16.msra.mxu0 %v1081
      %1095 = vmatprep.subr.bf16.mxu0 0
      %1096 = vmatpush1.bf16.msra.mxu0 %v1080
      %1097 = vmatprep.subr.bf16.mxu0 0
      %1098 = vmatpush1.bf16.msra.mxu0 %v1079
      %1099 = vmatprep.subr.bf16.mxu0 0
      %1100 = vmatpush1.bf16.msra.mxu0 %v1078
      %1101 = vmatprep.subr.bf16.mxu0 0
      %1102 = vmatpush1.bf16.msra.mxu0 %v1077
      %1103 = vmatprep.subr.bf16.mxu0 0
      %1104 = vmatpush1.bf16.msra.mxu0 %v1076
      %1105 = vmatprep.subr.bf16.mxu0 0
      %1106 = vmatpush1.bf16.msra.mxu0 %v1075
      %1107 = vmatprep.subr.bf16.mxu0 0
      %1108 = vmatpush2.bf16.msra.mxu0 0
      %1109 = vmatprep.subr.bf16.mxu0 0
      %1110 = vmatpush2.bf16.msra.mxu0 0
      %1111 = vmatprep.subr.bf16.mxu0 0
      %1112 = vmatpush2.bf16.msra.mxu0 0
      %1113 = vmatprep.subr.bf16.mxu0 0
      %1114 = vmatpush2.bf16.msra.mxu0 0
      %1115 = vmatprep.subr.bf16.mxu0 0
      %1116 = vmatpush2.bf16.msra.mxu0 0
      %1117 = vmatprep.subr.bf16.mxu0 0
      %1118 = vmatpush2.bf16.msra.mxu0 0
      %1119 = vmatprep.subr.bf16.mxu0 0
      %1120 = vmatpush2.bf16.msra.mxu0 0
      %1121 = vmatprep.subr.bf16.mxu0 0
      %1122 = vmatpush2.bf16.msra.mxu0 0
      %1123 = vmatprep.mubr.bf16.mxu0 0
      %1124 = vmatmul.mubr.bf16.gmra.mxu0 %v1004
      %v1125 = vpop.f32.mrf.mxu0
      %v1126 = vadd.f32 %v1041, %v1125
      %v1127 = vpop.f32.mrf.mxu0
      %v1128 = vpop.f32.mrf.mxu0
      %v1129 = vadd.f32 %v1041, %v1128
      %v1130 = vpop.f32.mrf.mxu0
      %1131 = vmatprep.mubr.bf16.mxu0 0
      %1132 = vmatmul.mubr.bf16.gmra.mxu0 %v1005
      %v1133 = vpop.f32.mrf.mxu0
      %v1134 = vadd.f32 %v1041, %v1133
      %v1135 = vpop.f32.mrf.mxu0
      %v1136 = vpop.f32.mrf.mxu0
      %v1137 = vadd.f32 %v1041, %v1136
      %v1138 = vpop.f32.mrf.mxu0
      %1139 = vmatprep.mubr.bf16.mxu0 0
      %1140 = vmatmul.mubr.bf16.gmra.mxu0 %v1006
      %v1141 = vpop.f32.mrf.mxu0
      %v1142 = vadd.f32 %v1041, %v1141
      %v1143 = vpop.f32.mrf.mxu0
      %v1144 = vpop.f32.mrf.mxu0
      %v1145 = vadd.f32 %v1041, %v1144
      %v1146 = vpop.f32.mrf.mxu0
      %1147 = vmatprep.mubr.bf16.mxu0 0
      %1148 = vmatmul.mubr.bf16.gmra.mxu0 %v1007
      %v1149 = vpop.f32.mrf.mxu0
      %v1150 = vadd.f32 %v1041, %v1149
      %v1151 = vpop.f32.mrf.mxu0
      %v1152 = vpop.f32.mrf.mxu0
      %v1153 = vadd.f32 %v1041, %v1152
      %v1154 = vpop.f32.mrf.mxu0
      %1155 = vmatprep.mubr.bf16.mxu0 0
      %1156 = vmatmul.mubr.bf16.gmra.mxu0 %v1008
      %v1157 = vpop.f32.mrf.mxu0
      %v1158 = vadd.f32 %v1041, %v1157
      %v1159 = vpop.f32.mrf.mxu0
      %v1160 = vpop.f32.mrf.mxu0
      %v1161 = vadd.f32 %v1041, %v1160
      %v1162 = vpop.f32.mrf.mxu0
      %1163 = vmatprep.mubr.bf16.mxu0 0
      %1164 = vmatmul.mubr.bf16.gmra.mxu0 %v1009
      %v1165 = vpop.f32.mrf.mxu0
      %v1166 = vadd.f32 %v1041, %v1165
      %v1167 = vpop.f32.mrf.mxu0
      %v1168 = vpop.f32.mrf.mxu0
      %v1169 = vadd.f32 %v1041, %v1168
      %v1170 = vpop.f32.mrf.mxu0
      %1171 = vmatprep.mubr.bf16.mxu0 0
      %1172 = vmatmul.mubr.bf16.gmra.mxu0 %v1010
      %v1173 = vpop.f32.mrf.mxu0
      %v1174 = vadd.f32 %v1041, %v1173
      %v1175 = vpop.f32.mrf.mxu0
      %v1176 = vpop.f32.mrf.mxu0
      %v1177 = vadd.f32 %v1041, %v1176
      %v1178 = vpop.f32.mrf.mxu0
      %1179 = vmatprep.mubr.bf16.mxu0 0
      %1180 = vmatmul.mubr.bf16.gmra.mxu0 %v1011
      %v1181 = vpop.f32.mrf.mxu0
      %v1182 = vadd.f32 %v1041, %v1181
      %v1183 = vpop.f32.mrf.mxu0
      %v1184 = vpop.f32.mrf.mxu0
      %v1185 = vadd.f32 %v1041, %v1184
      %v1186 = vpop.f32.mrf.mxu0
      %1187 = vmatprep.mubr.bf16.mxu0 0
      %1188 = vmatmul.mubr.bf16.gmra.mxu0 %v1012
      %v1189 = vpop.f32.mrf.mxu0
      %v1190 = vadd.f32 %v1041, %v1189
      %v1191 = vpop.f32.mrf.mxu0
      %v1192 = vpop.f32.mrf.mxu0
      %v1193 = vadd.f32 %v1041, %v1192
      %v1194 = vpop.f32.mrf.mxu0
      %1195 = vmatprep.mubr.bf16.mxu0 0
      %1196 = vmatmul.mubr.bf16.gmra.mxu0 %v1013
      %v1197 = vpop.f32.mrf.mxu0
      %v1198 = vadd.f32 %v1041, %v1197
      %v1199 = vpop.f32.mrf.mxu0
      %v1200 = vpop.f32.mrf.mxu0
      %v1201 = vadd.f32 %v1041, %v1200
      %v1202 = vpop.f32.mrf.mxu0
      %1203 = vmatprep.mubr.bf16.mxu0 0
      %1204 = vmatmul.mubr.bf16.gmra.mxu0 %v1014
      %v1205 = vpop.f32.mrf.mxu0
      %v1206 = vadd.f32 %v1041, %v1205
      %v1207 = vpop.f32.mrf.mxu0
      %v1208 = vpop.f32.mrf.mxu0
      %v1209 = vadd.f32 %v1041, %v1208
      %v1210 = vpop.f32.mrf.mxu0
      %1211 = vmatprep.mubr.bf16.mxu0 0
      %1212 = vmatmul.mubr.bf16.gmra.mxu0 %v1015
      %v1213 = vpop.f32.mrf.mxu0
      %v1214 = vadd.f32 %v1041, %v1213
      %v1215 = vpop.f32.mrf.mxu0
      %v1216 = vpop.f32.mrf.mxu0
      %v1217 = vadd.f32 %v1041, %v1216
      %v1218 = vpop.f32.mrf.mxu0
      %1219 = vmatprep.mubr.bf16.mxu0 0
      %1220 = vmatmul.mubr.bf16.gmra.mxu0 %v1016
      %v1221 = vpop.f32.mrf.mxu0
      %v1222 = vadd.f32 %v1041, %v1221
      %v1223 = vpop.f32.mrf.mxu0
      %v1224 = vpop.f32.mrf.mxu0
      %v1225 = vadd.f32 %v1041, %v1224
      %v1226 = vpop.f32.mrf.mxu0
      %1227 = vmatprep.mubr.bf16.mxu0 0
      %1228 = vmatmul.mubr.bf16.gmra.mxu0 %v1017
      %v1229 = vpop.f32.mrf.mxu0
      %v1230 = vadd.f32 %v1041, %v1229
      %v1231 = vpop.f32.mrf.mxu0
      %v1232 = vpop.f32.mrf.mxu0
      %v1233 = vadd.f32 %v1041, %v1232
      %v1234 = vpop.f32.mrf.mxu0
      %1235 = vmatprep.mubr.bf16.mxu0 0
      %1236 = vmatmul.mubr.bf16.gmra.mxu0 %v1018
      %v1237 = vpop.f32.mrf.mxu0
      %v1238 = vadd.f32 %v1041, %v1237
      %v1239 = vpop.f32.mrf.mxu0
      %v1240 = vpop.f32.mrf.mxu0
      %v1241 = vadd.f32 %v1041, %v1240
      %v1242 = vpop.f32.mrf.mxu0
      %1243 = vmatprep.mubr.bf16.mxu0 0
      %1244 = vmatmul.mubr.bf16.gmra.mxu0 %v1019
      %v1245 = vpop.f32.mrf.mxu0
      %v1246 = vadd.f32 %v1041, %v1245
      %v1247 = vpop.f32.mrf.mxu0
      %v1248 = vpop.f32.mrf.mxu0
      %v1249 = vadd.f32 %v1041, %v1248
      %v1250 = vpop.f32.mrf.mxu0
      %1251 = vdwg.mxu0
      %vm1252 = vcmask 130048
      %v1253 = vsel %vm1252, %v1126, -inf
      %1254 = vmax.xlane.f32.xlu0 %v1253
      %v1255 = vpop.xlane.xlu0 %1254
      %v1256 = vsel %vm1252, %v1129, -inf
      %1257 = vmax.xlane.f32.xlu0 %v1256
      %v1258 = vpop.xlane.xlu0 %1257
      %v1259 = vsel %vm1252, %v1134, -inf
      %1260 = vmax.xlane.f32.xlu0 %v1259
      %v1261 = vpop.xlane.xlu0 %1260
      %v1262 = vsel %vm1252, %v1137, -inf
      %1263 = vmax.xlane.f32.xlu0 %v1262
      %v1264 = vpop.xlane.xlu0 %1263
      %v1265 = vsel %vm1252, %v1142, -inf
      %1266 = vmax.xlane.f32.xlu0 %v1265
      %v1267 = vpop.xlane.xlu0 %1266
      %v1268 = vsel %vm1252, %v1145, -inf
      %1269 = vmax.xlane.f32.xlu0 %v1268
      %v1270 = vpop.xlane.xlu0 %1269
      %v1271 = vsel %vm1252, %v1150, -inf
      %1272 = vmax.xlane.f32.xlu0 %v1271
      %v1273 = vpop.xlane.xlu0 %1272
      %v1274 = vsel %vm1252, %v1153, -inf
      %1275 = vmax.xlane.f32.xlu0 %v1274
      %v1276 = vpop.xlane.xlu0 %1275
      %v1277 = vsel %vm1252, %v1158, -inf
      %1278 = vmax.xlane.f32.xlu0 %v1277
      %v1279 = vpop.xlane.xlu0 %1278
      %v1280 = vsel %vm1252, %v1161, -inf
      %1281 = vmax.xlane.f32.xlu0 %v1280
      %v1282 = vpop.xlane.xlu0 %1281
      %v1283 = vsel %vm1252, %v1166, -inf
      %1284 = vmax.xlane.f32.xlu0 %v1283
      %v1285 = vpop.xlane.xlu0 %1284
      %v1286 = vsel %vm1252, %v1169, -inf
      %1287 = vmax.xlane.f32.xlu0 %v1286
      %v1288 = vpop.xlane.xlu0 %1287
      %v1289 = vsel %vm1252, %v1174, -inf
      %1290 = vmax.xlane.f32.xlu0 %v1289
      %v1291 = vpop.xlane.xlu0 %1290
      %v1292 = vsel %vm1252, %v1177, -inf
      %1293 = vmax.xlane.f32.xlu0 %v1292
      %v1294 = vpop.xlane.xlu0 %1293
      %v1295 = vsel %vm1252, %v1182, -inf
      %1296 = vmax.xlane.f32.xlu0 %v1295
      %v1297 = vpop.xlane.xlu0 %1296
      %v1298 = vsel %vm1252, %v1185, -inf
      %1299 = vmax.xlane.f32.xlu0 %v1298
      %v1300 = vpop.xlane.xlu0 %1299
      %v1301 = vsel %vm1252, %v1190, -inf
      %1302 = vmax.xlane.f32.xlu0 %v1301
      %v1303 = vpop.xlane.xlu0 %1302
      %v1304 = vsel %vm1252, %v1193, -inf
      %1305 = vmax.xlane.f32.xlu0 %v1304
      %v1306 = vpop.xlane.xlu0 %1305
      %v1307 = vsel %vm1252, %v1198, -inf
      %1308 = vmax.xlane.f32.xlu0 %v1307
      %v1309 = vpop.xlane.xlu0 %1308
      %v1310 = vsel %vm1252, %v1201, -inf
      %1311 = vmax.xlane.f32.xlu0 %v1310
      %v1312 = vpop.xlane.xlu0 %1311
      %v1313 = vsel %vm1252, %v1206, -inf
      %1314 = vmax.xlane.f32.xlu0 %v1313
      %v1315 = vpop.xlane.xlu0 %1314
      %v1316 = vsel %vm1252, %v1209, -inf
      %1317 = vmax.xlane.f32.xlu0 %v1316
      %v1318 = vpop.xlane.xlu0 %1317
      %v1319 = vsel %vm1252, %v1214, -inf
      %1320 = vmax.xlane.f32.xlu0 %v1319
      %v1321 = vpop.xlane.xlu0 %1320
      %v1322 = vsel %vm1252, %v1217, -inf
      %1323 = vmax.xlane.f32.xlu0 %v1322
      %v1324 = vpop.xlane.xlu0 %1323
      %v1325 = vsel %vm1252, %v1222, -inf
      %1326 = vmax.xlane.f32.xlu0 %v1325
      %v1327 = vpop.xlane.xlu0 %1326
      %v1328 = vsel %vm1252, %v1225, -inf
      %1329 = vmax.xlane.f32.xlu0 %v1328
      %v1330 = vpop.xlane.xlu0 %1329
      %v1331 = vsel %vm1252, %v1230, -inf
      %1332 = vmax.xlane.f32.xlu0 %v1331
      %v1333 = vpop.xlane.xlu0 %1332
      %v1334 = vsel %vm1252, %v1233, -inf
      %1335 = vmax.xlane.f32.xlu0 %v1334
      %v1336 = vpop.xlane.xlu0 %1335
      %v1337 = vsel %vm1252, %v1238, -inf
      %1338 = vmax.xlane.f32.xlu0 %v1337
      %v1339 = vpop.xlane.xlu0 %1338
      %v1340 = vsel %vm1252, %v1241, -inf
      %1341 = vmax.xlane.f32.xlu0 %v1340
      %v1342 = vpop.xlane.xlu0 %1341
      %v1343 = vsel %vm1252, %v1246, -inf
      %1344 = vmax.xlane.f32.xlu0 %v1343
      %v1345 = vpop.xlane.xlu0 %1344
      %v1346 = vsel %vm1252, %v1249, -inf
      %1347 = vmax.xlane.f32.xlu0 %v1346
      %v1348 = vpop.xlane.xlu0 %1347
      %v1349 = vsub.f32 %v1126, %v1255
      %v1350 = vsub.f32 %v1129, %v1258
      %v1351 = vsub.f32 %v1134, %v1261
      %v1352 = vsub.f32 %v1137, %v1264
      %v1353 = vsub.f32 %v1142, %v1267
      %v1354 = vsub.f32 %v1145, %v1270
      %v1355 = vsub.f32 %v1150, %v1273
      %v1356 = vsub.f32 %v1153, %v1276
      %v1357 = vsub.f32 %v1158, %v1279
      %v1358 = vsub.f32 %v1161, %v1282
      %v1359 = vsub.f32 %v1166, %v1285
      %v1360 = vsub.f32 %v1169, %v1288
      %v1361 = vsub.f32 %v1174, %v1291
      %v1362 = vsub.f32 %v1177, %v1294
      %v1363 = vsub.f32 %v1182, %v1297
      %v1364 = vsub.f32 %v1185, %v1300
      %v1365 = vsub.f32 %v1190, %v1303
      %v1366 = vsub.f32 %v1193, %v1306
      %v1367 = vsub.f32 %v1198, %v1309
      %v1368 = vsub.f32 %v1201, %v1312
      %v1369 = vsub.f32 %v1206, %v1315
      %v1370 = vsub.f32 %v1209, %v1318
      %v1371 = vsub.f32 %v1214, %v1321
      %v1372 = vsub.f32 %v1217, %v1324
      %v1373 = vsub.f32 %v1222, %v1327
      %v1374 = vsub.f32 %v1225, %v1330
      %v1375 = vsub.f32 %v1230, %v1333
      %v1376 = vsub.f32 %v1233, %v1336
      %v1377 = vsub.f32 %v1238, %v1339
      %v1378 = vsub.f32 %v1241, %v1342
      %v1379 = vsub.f32 %v1246, %v1345
      %v1380 = vsub.f32 %v1249, %v1348
      %v1381 = vmul.f32 %v1349, 1.442695
      %v1382 = vpow.pop %v1381
      %v1383 = vmul.f32 %v1350, 1.442695
      %v1384 = vpow.pop %v1383
      %v1385 = vmul.f32 %v1351, 1.442695
      %v1386 = vpow.pop %v1385
      %v1387 = vmul.f32 %v1352, 1.442695
      %v1388 = vpow.pop %v1387
      %v1389 = vmul.f32 %v1353, 1.442695
      %v1390 = vpow.pop %v1389
      %v1391 = vmul.f32 %v1354, 1.442695
      %v1392 = vpow.pop %v1391
      %v1393 = vmul.f32 %v1355, 1.442695
      %v1394 = vpow.pop %v1393
      %v1395 = vmul.f32 %v1356, 1.442695
      %v1396 = vpow.pop %v1395
      %v1397 = vmul.f32 %v1357, 1.442695
      %v1398 = vpow.pop %v1397
      %v1399 = vmul.f32 %v1358, 1.442695
      %v1400 = vpow.pop %v1399
      %v1401 = vmul.f32 %v1359, 1.442695
      %v1402 = vpow.pop %v1401
      %v1403 = vmul.f32 %v1360, 1.442695
      %v1404 = vpow.pop %v1403
      %v1405 = vmul.f32 %v1361, 1.442695
      %v1406 = vpow.pop %v1405
      %v1407 = vmul.f32 %v1362, 1.442695
      %v1408 = vpow.pop %v1407
      %v1409 = vmul.f32 %v1363, 1.442695
      %v1410 = vpow.pop %v1409
      %v1411 = vmul.f32 %v1364, 1.442695
      %v1412 = vpow.pop %v1411
      %v1413 = vmul.f32 %v1365, 1.442695
      %v1414 = vpow.pop %v1413
      %v1415 = vmul.f32 %v1366, 1.442695
      %v1416 = vpow.pop %v1415
      %v1417 = vmul.f32 %v1367, 1.442695
      %v1418 = vpow.pop %v1417
      %v1419 = vmul.f32 %v1368, 1.442695
      %v1420 = vpow.pop %v1419
      %v1421 = vmul.f32 %v1369, 1.442695
      %v1422 = vpow.pop %v1421
      %v1423 = vmul.f32 %v1370, 1.442695
      %v1424 = vpow.pop %v1423
      %v1425 = vmul.f32 %v1371, 1.442695
      %v1426 = vpow.pop %v1425
      %v1427 = vmul.f32 %v1372, 1.442695
      %v1428 = vpow.pop %v1427
      %v1429 = vmul.f32 %v1373, 1.442695
      %v1430 = vpow.pop %v1429
      %v1431 = vmul.f32 %v1374, 1.442695
      %v1432 = vpow.pop %v1431
      %v1433 = vmul.f32 %v1375, 1.442695
      %v1434 = vpow.pop %v1433
      %v1435 = vmul.f32 %v1376, 1.442695
      %v1436 = vpow.pop %v1435
      %v1437 = vmul.f32 %v1377, 1.442695
      %v1438 = vpow.pop %v1437
      %v1439 = vmul.f32 %v1378, 1.442695
      %v1440 = vpow.pop %v1439
      %v1441 = vmul.f32 %v1379, 1.442695
      %v1442 = vpow.pop %v1441
      %v1443 = vmul.f32 %v1380, 1.442695
      %v1444 = vpow.pop %v1443
      %v1445 = vsel %vm1252, %v1382, 0.0
      %1446 = vadd.xlane.f32.xlu0 %v1445
      %v1447 = vpop.xlane.xlu0 %1446
      %v1448 = vsel %vm1252, %v1384, 0.0
      %1449 = vadd.xlane.f32.xlu0 %v1448
      %v1450 = vpop.xlane.xlu0 %1449
      %v1451 = vsel %vm1252, %v1386, 0.0
      %1452 = vadd.xlane.f32.xlu0 %v1451
      %v1453 = vpop.xlane.xlu0 %1452
      %v1454 = vsel %vm1252, %v1388, 0.0
      %1455 = vadd.xlane.f32.xlu0 %v1454
      %v1456 = vpop.xlane.xlu0 %1455
      %v1457 = vsel %vm1252, %v1390, 0.0
      %1458 = vadd.xlane.f32.xlu0 %v1457
      %v1459 = vpop.xlane.xlu0 %1458
      %v1460 = vsel %vm1252, %v1392, 0.0
      %1461 = vadd.xlane.f32.xlu0 %v1460
      %v1462 = vpop.xlane.xlu0 %1461
      %v1463 = vsel %vm1252, %v1394, 0.0
      %1464 = vadd.xlane.f32.xlu0 %v1463
      %v1465 = vpop.xlane.xlu0 %1464
      %v1466 = vsel %vm1252, %v1396, 0.0
      %1467 = vadd.xlane.f32.xlu0 %v1466
      %v1468 = vpop.xlane.xlu0 %1467
      %v1469 = vsel %vm1252, %v1398, 0.0
      %1470 = vadd.xlane.f32.xlu0 %v1469
      %v1471 = vpop.xlane.xlu0 %1470
      %v1472 = vsel %vm1252, %v1400, 0.0
      %1473 = vadd.xlane.f32.xlu0 %v1472
      %v1474 = vpop.xlane.xlu0 %1473
      %v1475 = vsel %vm1252, %v1402, 0.0
      %1476 = vadd.xlane.f32.xlu0 %v1475
      %v1477 = vpop.xlane.xlu0 %1476
      %v1478 = vsel %vm1252, %v1404, 0.0
      %1479 = vadd.xlane.f32.xlu0 %v1478
      %v1480 = vpop.xlane.xlu0 %1479
      %v1481 = vsel %vm1252, %v1406, 0.0
      %1482 = vadd.xlane.f32.xlu0 %v1481
      %v1483 = vpop.xlane.xlu0 %1482
      %v1484 = vsel %vm1252, %v1408, 0.0
      %1485 = vadd.xlane.f32.xlu0 %v1484
      %v1486 = vpop.xlane.xlu0 %1485
      %v1487 = vsel %vm1252, %v1410, 0.0
      %1488 = vadd.xlane.f32.xlu0 %v1487
      %v1489 = vpop.xlane.xlu0 %1488
      %v1490 = vsel %vm1252, %v1412, 0.0
      %1491 = vadd.xlane.f32.xlu0 %v1490
      %v1492 = vpop.xlane.xlu0 %1491
      %v1493 = vsel %vm1252, %v1414, 0.0
      %1494 = vadd.xlane.f32.xlu0 %v1493
      %v1495 = vpop.xlane.xlu0 %1494
      %v1496 = vsel %vm1252, %v1416, 0.0
      %1497 = vadd.xlane.f32.xlu0 %v1496
      %v1498 = vpop.xlane.xlu0 %1497
      %v1499 = vsel %vm1252, %v1418, 0.0
      %1500 = vadd.xlane.f32.xlu0 %v1499
      %v1501 = vpop.xlane.xlu0 %1500
      %v1502 = vsel %vm1252, %v1420, 0.0
      %1503 = vadd.xlane.f32.xlu0 %v1502
      %v1504 = vpop.xlane.xlu0 %1503
      %v1505 = vsel %vm1252, %v1422, 0.0
      %1506 = vadd.xlane.f32.xlu0 %v1505
      %v1507 = vpop.xlane.xlu0 %1506
      %v1508 = vsel %vm1252, %v1424, 0.0
      %1509 = vadd.xlane.f32.xlu0 %v1508
      %v1510 = vpop.xlane.xlu0 %1509
      %v1511 = vsel %vm1252, %v1426, 0.0
      %1512 = vadd.xlane.f32.xlu0 %v1511
      %v1513 = vpop.xlane.xlu0 %1512
      %v1514 = vsel %vm1252, %v1428, 0.0
      %1515 = vadd.xlane.f32.xlu0 %v1514
      %v1516 = vpop.xlane.xlu0 %1515
      %v1517 = vsel %vm1252, %v1430, 0.0
      %1518 = vadd.xlane.f32.xlu0 %v1517
      %v1519 = vpop.xlane.xlu0 %1518
      %v1520 = vsel %vm1252, %v1432, 0.0
      %1521 = vadd.xlane.f32.xlu0 %v1520
      %v1522 = vpop.xlane.xlu0 %1521
      %v1523 = vsel %vm1252, %v1434, 0.0
      %1524 = vadd.xlane.f32.xlu0 %v1523
      %v1525 = vpop.xlane.xlu0 %1524
      %v1526 = vsel %vm1252, %v1436, 0.0
      %1527 = vadd.xlane.f32.xlu0 %v1526
      %v1528 = vpop.xlane.xlu0 %1527
      %v1529 = vsel %vm1252, %v1438, 0.0
      %1530 = vadd.xlane.f32.xlu0 %v1529
      %v1531 = vpop.xlane.xlu0 %1530
      %v1532 = vsel %vm1252, %v1440, 0.0
      %1533 = vadd.xlane.f32.xlu0 %v1532
      %v1534 = vpop.xlane.xlu0 %1533
      %v1535 = vsel %vm1252, %v1442, 0.0
      %1536 = vadd.xlane.f32.xlu0 %v1535
      %v1537 = vpop.xlane.xlu0 %1536
      %v1538 = vsel %vm1252, %v1444, 0.0
      %1539 = vadd.xlane.f32.xlu0 %v1538
      %v1540 = vpop.xlane.xlu0 %1539
      %v1541 = vrcp.pop %v1447
      %v1542 = vmul.f32 %v1382, %v1541
      %v1543 = vrcp.pop %v1450
      %v1544 = vmul.f32 %v1384, %v1543
      %v1545 = vrcp.pop %v1453
      %v1546 = vmul.f32 %v1386, %v1545
      %v1547 = vrcp.pop %v1456
      %v1548 = vmul.f32 %v1388, %v1547
      %v1549 = vrcp.pop %v1459
      %v1550 = vmul.f32 %v1390, %v1549
      %v1551 = vrcp.pop %v1462
      %v1552 = vmul.f32 %v1392, %v1551
      %v1553 = vrcp.pop %v1465
      %v1554 = vmul.f32 %v1394, %v1553
      %v1555 = vrcp.pop %v1468
      %v1556 = vmul.f32 %v1396, %v1555
      %v1557 = vrcp.pop %v1471
      %v1558 = vmul.f32 %v1398, %v1557
      %v1559 = vrcp.pop %v1474
      %v1560 = vmul.f32 %v1400, %v1559
      %v1561 = vrcp.pop %v1477
      %v1562 = vmul.f32 %v1402, %v1561
      %v1563 = vrcp.pop %v1480
      %v1564 = vmul.f32 %v1404, %v1563
      %v1565 = vrcp.pop %v1483
      %v1566 = vmul.f32 %v1406, %v1565
      %v1567 = vrcp.pop %v1486
      %v1568 = vmul.f32 %v1408, %v1567
      %v1569 = vrcp.pop %v1489
      %v1570 = vmul.f32 %v1410, %v1569
      %v1571 = vrcp.pop %v1492
      %v1572 = vmul.f32 %v1412, %v1571
      %v1573 = vrcp.pop %v1495
      %v1574 = vmul.f32 %v1414, %v1573
      %v1575 = vrcp.pop %v1498
      %v1576 = vmul.f32 %v1416, %v1575
      %v1577 = vrcp.pop %v1501
      %v1578 = vmul.f32 %v1418, %v1577
      %v1579 = vrcp.pop %v1504
      %v1580 = vmul.f32 %v1420, %v1579
      %v1581 = vrcp.pop %v1507
      %v1582 = vmul.f32 %v1422, %v1581
      %v1583 = vrcp.pop %v1510
      %v1584 = vmul.f32 %v1424, %v1583
      %v1585 = vrcp.pop %v1513
      %v1586 = vmul.f32 %v1426, %v1585
      %v1587 = vrcp.pop %v1516
      %v1588 = vmul.f32 %v1428, %v1587
      %v1589 = vrcp.pop %v1519
      %v1590 = vmul.f32 %v1430, %v1589
      %v1591 = vrcp.pop %v1522
      %v1592 = vmul.f32 %v1432, %v1591
      %v1593 = vrcp.pop %v1525
      %v1594 = vmul.f32 %v1434, %v1593
      %v1595 = vrcp.pop %v1528
      %v1596 = vmul.f32 %v1436, %v1595
      %v1597 = vrcp.pop %v1531
      %v1598 = vmul.f32 %v1438, %v1597
      %v1599 = vrcp.pop %v1534
      %v1600 = vmul.f32 %v1440, %v1599
      %v1601 = vrcp.pop %v1537
      %v1602 = vmul.f32 %v1442, %v1601
      %v1603 = vrcp.pop %v1540
      %v1604 = vmul.f32 %v1444, %v1603
      %1605 = vst.msk [vmem:[%s280] sm:$0xff] %vm1252, %v1542
      %1606 = vst.msk [vmem:[%s280 + $0x8] sm:$0xff] %vm1252, %v1544
      %1607 = vst.msk [vmem:[%s280 + $0x10] sm:$0xff] %vm1252, %v1546
      %1608 = vst.msk [vmem:[%s280 + $0x18] sm:$0xff] %vm1252, %v1548
      %1609 = vst.msk [vmem:[%s280 + $0x20] sm:$0xff] %vm1252, %v1550
      %1610 = vst.msk [vmem:[%s280 + $0x28] sm:$0xff] %vm1252, %v1552
      %1611 = vst.msk [vmem:[%s280 + $0x30] sm:$0xff] %vm1252, %v1554
      %1612 = vst.msk [vmem:[%s280 + $0x38] sm:$0xff] %vm1252, %v1556
      %1613 = vst.msk [vmem:[%s280 + $0x40] sm:$0xff] %vm1252, %v1558
      %1614 = vst.msk [vmem:[%s280 + $0x48] sm:$0xff] %vm1252, %v1560
      %1615 = vst.msk [vmem:[%s280 + $0x50] sm:$0xff] %vm1252, %v1562
      %1616 = vst.msk [vmem:[%s280 + $0x58] sm:$0xff] %vm1252, %v1564
      %1617 = vst.msk [vmem:[%s280 + $0x60] sm:$0xff] %vm1252, %v1566
      %1618 = vst.msk [vmem:[%s280 + $0x68] sm:$0xff] %vm1252, %v1568
      %1619 = vst.msk [vmem:[%s280 + $0x70] sm:$0xff] %vm1252, %v1570
      %1620 = vst.msk [vmem:[%s280 + $0x78] sm:$0xff] %vm1252, %v1572
      %1621 = vst.msk [vmem:[%s280 + $0x80] sm:$0xff] %vm1252, %v1574
      %1622 = vst.msk [vmem:[%s280 + $0x88] sm:$0xff] %vm1252, %v1576
      %1623 = vst.msk [vmem:[%s280 + $0x90] sm:$0xff] %vm1252, %v1578
      %1624 = vst.msk [vmem:[%s280 + $0x98] sm:$0xff] %vm1252, %v1580
      %1625 = vst.msk [vmem:[%s280 + $0xa0] sm:$0xff] %vm1252, %v1582
      %1626 = vst.msk [vmem:[%s280 + $0xa8] sm:$0xff] %vm1252, %v1584
      %1627 = vst.msk [vmem:[%s280 + $0xb0] sm:$0xff] %vm1252, %v1586
      %1628 = vst.msk [vmem:[%s280 + $0xb8] sm:$0xff] %vm1252, %v1588
      %1629 = vst.msk [vmem:[%s280 + $0xc0] sm:$0xff] %vm1252, %v1590
      %1630 = vst.msk [vmem:[%s280 + $0xc8] sm:$0xff] %vm1252, %v1592
      %1631 = vst.msk [vmem:[%s280 + $0xd0] sm:$0xff] %vm1252, %v1594
      %1632 = vst.msk [vmem:[%s280 + $0xd8] sm:$0xff] %vm1252, %v1596
      %1633 = vst.msk [vmem:[%s280 + $0xe0] sm:$0xff] %vm1252, %v1598
      %1634 = vst.msk [vmem:[%s280 + $0xe8] sm:$0xff] %vm1252, %v1600
      %1635 = vst.msk [vmem:[%s280 + $0xf0] sm:$0xff] %vm1252, %v1602
      %1636 = vst.msk [vmem:[%s280 + $0xf8] sm:$0xff] %vm1252, %v1604
      %s1637 = smul.u32 32, %s18
      %p1638 = scmp.lt.s32.totalorder %s1637, 63
      %s1639 = scalar_select %p1638, %s1637, 63
      %s1640 = smul.addr %s1639, 8
      %s1641 = scalar_lea.vmem %s7, %s1640
      // Predicated region
      $region49: #{tpu_custom_call.1} parent=47 // pred_check
        %p1642 = pneg %p188
      $region50: #{tpu_custom_call.1} parent=47 // pred_check_branch
        %1644 = sbr.rel (%p1642) target = $region52
      $region51: #{tpu_custom_call.1} parent=47 // pred_region
        %s1645 = smul.u32 32, %s18
      $region52: #{tpu_custom_call.1} parent=47 // pred_fallthru
        _
    $region48: #{tpu_custom_call.1} parent=5 // pred_fallthru
      _
    %p1646 = scmp.le.s32.totalorder 2, %s13
    // Predicated region
    $region53: #{tpu_custom_call.1} parent=5 // pred_check
      %p1647 = pneg %p1646
    $region54: #{tpu_custom_call.1} parent=5 // pred_check_branch
      %1649 = sbr.rel (%p1647) target = $region56
    $region55: #{tpu_custom_call.1} parent=5 // pred_region
      %s1650 = ssub.s32 %s13, 2
      // Predicated region
      $region57: #{tpu_custom_call.1} parent=55 // pred_check
        %p1651 = pneg %p194
      $region58: #{tpu_custom_call.1} parent=55 // pred_check_branch
        %1653 = sbr.rel (%p1651) target = $region60
      $region59: #{tpu_custom_call.1} parent=55 // pred_region
        %s1654 = smul.u32 32, %s19
        %p1655 = scmp.lt.s32.totalorder %s1654, 63
        %s1656 = scalar_select %p1655, %s1654, 63
        %s1657 = smul.addr %s1656, 8
        %s1658 = scalar_lea.vmem %s7, %s1657
      $region60: #{tpu_custom_call.1} parent=55 // pred_fallthru
        _
    $region56: #{tpu_custom_call.1} parent=5 // pred_fallthru
      _
  $region6: #{tpu_custom_call.1} parent=0 // loop_footer
    %s17 = sadd.s32 1, %s13
  $region7: #{tpu_custom_call.1} parent=0 // loop_footer_branch
    %12 = sbr.rel target = $region3
  $region8: #{tpu_custom_call.1} parent=0 // loop_exit
    _

</llo_original>
